<compile_context>
chip_gen: v6e
topology: v6e:2x2x1
jax: 0.10.0
libtpu: 0.0.40
codegen_flags: <defaults>
</compile_context>

<pallas_src>
import functools

import jax
import jax.numpy as jnp
from jax.experimental import pallas as pl
from jax.experimental.pallas import tpu as pltpu


def _round_up(a, b):
    return (a + b - 1) // b * b


def _cross_attn_kernel(x_ref, kT_ref, v_ref, gamma_ref, beta_ref,
                       wq_ref, wout_ref, o_ref, *,
                       heads, dim_head, dim, dim_pad, exp_bf16):
    tile_n = x_ref.shape[0]

    # ---- LayerNorm over the TRUE feature width `dim` (F.layer_norm, eps=1e-5).
    # Padded lanes of x are zero and gamma/beta are zero there, so padded
    # columns of x_ln stay exactly zero.  f32 math (v5e VPU has no bf16).
    x = x_ref[...]                                              # (tile_n, dim_pad) f32
    inv_dim = 1.0 / dim
    mean = jnp.sum(x, axis=-1, keepdims=True) * inv_dim
    var = jnp.sum(x * x, axis=-1, keepdims=True) * inv_dim - mean * mean
    x_ln = (x - mean) * jax.lax.rsqrt(var + 1e-5) * gamma_ref[...] + beta_ref[...]
    x_bf = x_ln.astype(jnp.bfloat16)

    # ---- per-head q projections (scale pre-folded into Wq in the wrapper).
    # Wq is head-major (heads*dim_pad, dim_head): ref row-slices are free,
    # results are concatenated along sublanes (no lane restack, no VMEM trip).
    q_parts = []
    for h in range(heads):
        w_h = wq_ref[h * dim_pad:(h + 1) * dim_pad, :]          # (dim_pad, dim_head) bf16
        q_parts.append(jnp.dot(x_bf, w_h, preferred_element_type=jnp.float32))
    q_flat = jnp.concatenate(q_parts, axis=0) if heads > 1 else q_parts[0]
    q_bf = q_flat.astype(jnp.bfloat16)                          # (heads*tile_n, dim_head)

    # ---- attention for ALL heads: one sim matmul + one PV matmul.
    # k arrives pre-transposed as (dim_head, M) -> standard MXU RHS, no vxpose.
    sim = jnp.dot(q_bf, kT_ref[...], preferred_element_type=jnp.float32)   # (H*tile_n, M)
    sim = sim - jnp.max(sim, axis=-1, keepdims=True)
    if exp_bf16:
        # v6e/v7x: bf16 EUP ~2x exp throughput; denominator accumulated in f32.
        p_bf = jnp.exp(sim.astype(jnp.bfloat16))
        denom = jnp.sum(p_bf, axis=-1, keepdims=True, dtype=jnp.float32)
    else:
        p = jnp.exp(sim)
        denom = jnp.sum(p, axis=-1, keepdims=True)
        p_bf = p.astype(jnp.bfloat16)

    out_h = jnp.dot(p_bf, v_ref[...], preferred_element_type=jnp.float32)  # (H*tile_n, D)
    # Deferred softmax normalization on the narrow (rows, D) output (EUP recip).
    out_h = out_h * pl.reciprocal(denom, approx=True)
    out_bf = out_h.astype(jnp.bfloat16)

    # ---- per-head accumulating output projection (no concat-heads restack).
    acc = jnp.zeros((tile_n, dim_pad), jnp.float32)
    for h in range(heads):
        acc = acc + jnp.dot(out_bf[h * tile_n:(h + 1) * tile_n, :],
                            wout_ref[h * dim_head:(h + 1) * dim_head, :],
                            preferred_element_type=jnp.float32)
    o_ref[...] = acc.astype(o_ref.dtype)                        # lane-dense store


def cross_attention(x, context, gamma, beta, wq, wkv, wout, *, heads, dim_head,
                    tile_n=None):
    """x: (B, N, DIM) f32, context: (B, M, CDIM) f32.
    Weights in PyTorch nn.Linear layout: wq (H*D, DIM), wkv (2*D, CDIM), wout (DIM, H*D)."""
    B, N, DIM = x.shape
    _, M, CDIM = context.shape
    inner = heads * dim_head
    scale = dim_head ** -0.5
    dim_pad = _round_up(DIM, 128)          # lane-dense LN / output stores

    # ---- parameter prep (once per call here; fold at init time in a real model) ----
    wq_t = jnp.pad(wq.T.astype(jnp.float32) * scale,
                   ((0, dim_pad - DIM), (0, 0)))                         # (dim_pad, inner)
    wq_hm = (wq_t.reshape(dim_pad, heads, dim_head)                      # head-major rows
                 .transpose(1, 0, 2)
                 .reshape(heads * dim_pad, dim_head)
                 .astype(jnp.bfloat16))                                  # (H*dim_pad, D)
    wout_t = jnp.pad(wout.T.astype(jnp.float32),
                     ((0, 0), (0, dim_pad - DIM))).astype(jnp.bfloat16)  # (inner, dim_pad)

    # ---- k/v precomputed once per batch (plain XLA matmul, f32 accumulation) ----
    ctx_bf = context.astype(jnp.bfloat16)
    wk = wkv[:dim_head, :].astype(jnp.bfloat16)                          # (D, CDIM)
    wv = wkv[dim_head:, :].astype(jnp.bfloat16)
    kT = jnp.einsum('dc,bmc->bdm', wk, ctx_bf,
                    preferred_element_type=jnp.float32).astype(jnp.bfloat16)  # (B, D, M)
    v = jnp.einsum('dc,bmc->bmd', wv, ctx_bf,
                   preferred_element_type=jnp.float32).astype(jnp.bfloat16)   # (B, M, D)

    gamma2 = jnp.pad(gamma.reshape(1, DIM).astype(jnp.float32),
                     ((0, 0), (0, dim_pad - DIM)))
    beta2 = jnp.pad(beta.reshape(1, DIM).astype(jnp.float32),
                    ((0, 0), (0, dim_pad - DIM)))

    x_pad = x.astype(jnp.float32)
    if dim_pad != DIM:
        x_pad = jnp.pad(x_pad, ((0, 0), (0, 0), (0, dim_pad - DIM)))

    # ---- generation-aware budgets ----
    kind = ""
    try:
        kind = jax.devices()[0].device_kind.lower()
    except Exception:
        pass
    try:
        vmem_cap = int(pltpu.get_tpu_info().vmem_capacity_bytes)
    except Exception:
        # Key off device kind instead of assuming the smallest part.
        vmem_cap = 64 * 1024 * 1024 if "v7" in kind else 128 * 1024 * 1024
    vmem_limit = int(min(vmem_cap * 3 // 4, 100 * 1024 * 1024))
    exp_bf16 = ("v6" in kind) or ("v7" in kind)   # bf16 EUP generations only

    if tile_n is None:
        cap = 512 if vmem_cap >= 96 * 1024 * 1024 else 256
        tile_n = min(_round_up(N, 8), cap)

        def _est(t):  # rough per-grid-step working-set estimate (bytes)
            sim_b = 2 * heads * t * M * 4                       # sim + p (f32 bound)
            io_b = 2 * (2 * t * dim_pad * 4)                    # double-buffered x / out
            kv_b = 2 * (2 * M * dim_head * 2)                   # double-buffered kT / v
            w_b = 2 * (heads * dim_pad * dim_head + inner * dim_pad + 2 * dim_pad) * 2
            live_b = heads * t * dim_head * 6 + t * dim_pad * 4 # q/out values + acc
            return sim_b + io_b + kv_b + w_b + live_b

        budget = int(vmem_limit * 0.8)
        while tile_n > 8 and _est(tile_n) > budget:
            tile_n = max(8, _round_up(tile_n // 2, 8))

        # v7x has 2 TensorCores: make sure the parallel grid has >= 2 steps.
        if B == 1 and _round_up(N, tile_n) // tile_n < 2 and N > 8:
            tile_n = max(8, _round_up((N + 1) // 2, 8))

    n_pad = _round_up(N, tile_n)
    if n_pad != N:
        x_pad = jnp.pad(x_pad, ((0, 0), (0, n_pad - N), (0, 0)))
    n_tiles = n_pad // tile_n

    # TODO(synk): for very long contexts on v7x (64 MiB VMEM), add an M grid
    # axis with flash-style online softmax instead of shrinking tile_n; for
    # tiny N*B, block several batch rows per grid step to amortize overhead.

    kernel = functools.partial(_cross_attn_kernel, heads=heads, dim_head=dim_head,
                               dim=DIM, dim_pad=dim_pad, exp_bf16=exp_bf16)

    def _call(single_buffer_consts):
        const_kw = {"pipeline_mode": pl.Buffered(1)} if single_buffer_consts else {}
        grid_spec = pltpu.PrefetchScalarGridSpec(
            num_scalar_prefetch=0,
            grid=(B, n_tiles),
            in_specs=[
                pl.BlockSpec((pl.Squeezed(), tile_n, dim_pad), lambda b, nt: (b, nt, 0)),  # x
                pl.BlockSpec((pl.Squeezed(), dim_head, M), lambda b, nt: (b, 0, 0)),       # k^T
                pl.BlockSpec((pl.Squeezed(), M, dim_head), lambda b, nt: (b, 0, 0)),       # v
                pl.BlockSpec((1, dim_pad), lambda b, nt: (0, 0), **const_kw),              # gamma
                pl.BlockSpec((1, dim_pad), lambda b, nt: (0, 0), **const_kw),              # beta
                pl.BlockSpec((heads * dim_pad, dim_head), lambda b, nt: (0, 0), **const_kw),  # Wq head-major
                pl.BlockSpec((inner, dim_pad), lambda b, nt: (0, 0), **const_kw),          # Wout^T
            ],
            out_specs=pl.BlockSpec((pl.Squeezed(), tile_n, dim_pad), lambda b, nt: (b, nt, 0)),
        )
        return pl.pallas_call(
            kernel,
            out_shape=jax.ShapeDtypeStruct((B, n_pad, dim_pad), jnp.float32),
            grid_spec=grid_spec,
            compiler_params=pltpu.CompilerParams(
                dimension_semantics=("parallel", "parallel"),
                vmem_limit_bytes=vmem_limit),
        )(x_pad, kT, v, gamma2, beta2, wq_hm, wout_t)

    try:
        out = _call(True)       # single-buffer constant blocks (VMEM headroom)
    except Exception:
        out = _call(False)      # fall back to default buffering if rejected

    if n_pad != N or dim_pad != DIM:
        out = out[:, :N, :DIM]
    return out


def cross_attention_ref(x, context, gamma, beta, wq, wkv, wout, *, heads, dim_head,
                        matmul_dtype=jnp.float32):
    """Plain-JAX reference mirroring the PyTorch forward.  matmul_dtype=bfloat16
    mirrors the kernel's mixed-precision matmuls (f32 accumulation)."""
    scale = dim_head ** -0.5

    def mm(a, b):
        return jnp.matmul(a.astype(matmul_dtype), b.astype(matmul_dtype),
                          preferred_element_type=jnp.float32)

    mean = jnp.mean(x, axis=-1, keepdims=True)
    var = jnp.mean((x - mean) ** 2, axis=-1, keepdims=True)
    x_ln = (x - mean) / jnp.sqrt(var + 1e-5) * gamma + beta

    q = mm(x_ln, wq.T) * scale                          # (B, N, H*D)
    B, N, _ = q.shape
    q = q.reshape(B, N, heads, dim_head).transpose(0, 2, 1, 3)   # (B, H, N, D)
    kv = mm(context, wkv.T)                             # (B, M, 2*D)
    k, v = kv[..., :dim_head], kv[..., dim_head:]
    sim = jnp.einsum('bhid,bjd->bhij', q.astype(matmul_dtype), k.astype(matmul_dtype),
                     preferred_element_type=jnp.float32)
    sim = sim - jnp.max(sim, axis=-1, keepdims=True)
    attn = jax.nn.softmax(sim, axis=-1)
    out = jnp.einsum('bhij,bjd->bhid', attn.astype(matmul_dtype), v.astype(matmul_dtype),
                     preferred_element_type=jnp.float32)
    out = out.transpose(0, 2, 1, 3).reshape(B, N, heads * dim_head)
    return mm(out, wout.T)


if __name__ == "__main__":
    # Small shapes consistent with the module.
    B, N, M = 2, 8, 8
    DIM, CDIM = 32, 32
    HEADS, DIM_HEAD = 4, 16
    INNER = HEADS * DIM_HEAD

    key = jax.random.PRNGKey(0)
    kx, kc, kq, kkv, ko = jax.random.split(key, 5)

    x = jax.random.normal(kx, (B, N, DIM), dtype=jnp.float32)
    context = jax.random.normal(kc, (B, M, CDIM), dtype=jnp.float32)

    gamma = jnp.ones((DIM,), dtype=jnp.float32)
    beta = jnp.zeros((DIM,), dtype=jnp.float32)
    # PyTorch nn.Linear weight layouts (out_features, in_features).
    wq = jax.random.normal(kq, (INNER, DIM), dtype=jnp.float32) * 0.05
    wkv = jax.random.normal(kkv, (2 * DIM_HEAD, CDIM), dtype=jnp.float32) * 0.05
    wout = jax.random.normal(ko, (DIM, INNER), dtype=jnp.float32) * 0.05

    out = cross_attention(x, context, gamma, beta, wq, wkv, wout,
                          heads=HEADS, dim_head=DIM_HEAD)
    out = jax.block_until_ready(out)
    assert out.shape == (B, N, DIM)

    # Check vs a reference mirroring the kernel's bf16 matmul precision.
    ref_bf16 = cross_attention_ref(x, context, gamma, beta, wq, wkv, wout,
                                   heads=HEADS, dim_head=DIM_HEAD,
                                   matmul_dtype=jnp.bfloat16)
    assert jnp.allclose(out, ref_bf16, atol=1e-2, rtol=1e-2), "mismatch vs bf16 reference"

    # Sanity check vs the full-f32 (PyTorch-equivalent) reference.
    ref_f32 = cross_attention_ref(x, context, gamma, beta, wq, wkv, wout,
                                  heads=HEADS, dim_head=DIM_HEAD,
                                  matmul_dtype=jnp.float32)
    assert jnp.allclose(out, ref_f32, atol=3e-2, rtol=3e-2), "mismatch vs f32 reference"

    print("KERNEL_OK")
</pallas_src>

<mosaic_0001>
module attributes {stable_mosaic.version = 11 : i64} {
  func.func @_cross_attn_kernel(%arg0: i32, %arg1: i32, %arg2: memref<1x8x128xf32, #tpu.memory_space<vmem>>, %arg3: memref<1x16x8xbf16, #tpu.memory_space<vmem>>, %arg4: memref<1x8x16xbf16, #tpu.memory_space<vmem>>, %arg5: memref<1x128xf32, #tpu.memory_space<vmem>>, %arg6: memref<1x128xf32, #tpu.memory_space<vmem>>, %arg7: memref<512x16xbf16, #tpu.memory_space<vmem>>, %arg8: memref<64x128xbf16, #tpu.memory_space<vmem>>, %arg9: memref<1x8x128xf32, #tpu.memory_space<vmem>>) attributes {dimension_semantics = [#tpu.dimension_semantics<parallel>, #tpu.dimension_semantics<parallel>], iteration_bounds = array<i64: 2, 1>, scalar_prefetch = 0 : i64, scratch_operands = 0 : i64, tpu.core_type = #tpu.core_type<tc>, window_params = [{transform_indices = @transform_0, window_bounds = array<i64: 1, 8, 128>}, {transform_indices = @transform_1, window_bounds = array<i64: 1, 16, 8>}, {transform_indices = @transform_2, window_bounds = array<i64: 1, 8, 16>}, {pipeline_mode = #tpu.pipeline_mode<synchronous>, transform_indices = @transform_3, window_bounds = array<i64: 1, 128>}, {pipeline_mode = #tpu.pipeline_mode<synchronous>, transform_indices = @transform_4, window_bounds = array<i64: 1, 128>}, {pipeline_mode = #tpu.pipeline_mode<synchronous>, transform_indices = @transform_5, window_bounds = array<i64: 512, 16>}, {pipeline_mode = #tpu.pipeline_mode<synchronous>, transform_indices = @transform_6, window_bounds = array<i64: 64, 128>}, {transform_indices = @transform_7, window_bounds = array<i64: 1, 8, 128>}]} {
    %c0 = arith.constant 0 : index
    %c0_0 = arith.constant 0 : index
    %c0_1 = arith.constant 0 : index
    %0 = vector.load %arg2[%c0, %c0_0, %c0_1] : memref<1x8x128xf32, #tpu.memory_space<vmem>>, vector<1x8x128xf32>
    %1 = vector.shape_cast %0 : vector<1x8x128xf32> to vector<8x128xf32>
    %cst = arith.constant dense<0.000000e+00> : vector<8xf32>
    %2 = vector.multi_reduction <add>, %1, %cst [1] : vector<8x128xf32> to vector<8xf32>
    %3 = vector.shape_cast %2 : vector<8xf32> to vector<8x1xf32>
    %cst_2 = arith.constant 3.125000e-02 : f32
    %4 = vector.broadcast %cst_2 : f32 to vector<8x1xf32>
    %5 = arith.mulf %3, %4 : vector<8x1xf32>
    %6 = arith.mulf %1, %1 : vector<8x128xf32>
    %cst_3 = arith.constant dense<0.000000e+00> : vector<8xf32>
    %7 = vector.multi_reduction <add>, %6, %cst_3 [1] : vector<8x128xf32> to vector<8xf32>
    %8 = vector.shape_cast %7 : vector<8xf32> to vector<8x1xf32>
    %cst_4 = arith.constant 3.125000e-02 : f32
    %9 = vector.broadcast %cst_4 : f32 to vector<8x1xf32>
    %10 = arith.mulf %8, %9 : vector<8x1xf32>
    %11 = arith.mulf %5, %5 : vector<8x1xf32>
    %12 = arith.subf %10, %11 : vector<8x1xf32>
    %13 = vector.broadcast %5 : vector<8x1xf32> to vector<8x128xf32>
    %14 = arith.subf %1, %13 : vector<8x128xf32>
    %cst_5 = arith.constant 9.99999974E-6 : f32
    %15 = vector.broadcast %cst_5 : f32 to vector<8x1xf32>
    %16 = arith.addf %12, %15 : vector<8x1xf32>
    %17 = math.rsqrt %16 : vector<8x1xf32>
    %18 = vector.broadcast %17 : vector<8x1xf32> to vector<8x128xf32>
    %19 = arith.mulf %14, %18 : vector<8x128xf32>
    %c0_6 = arith.constant 0 : index
    %c0_7 = arith.constant 0 : index
    %20 = vector.load %arg5[%c0_6, %c0_7] : memref<1x128xf32, #tpu.memory_space<vmem>>, vector<1x128xf32>
    %21 = vector.broadcast %20 : vector<1x128xf32> to vector<8x128xf32>
    %22 = arith.mulf %19, %21 : vector<8x128xf32>
    %c0_8 = arith.constant 0 : index
    %c0_9 = arith.constant 0 : index
    %23 = vector.load %arg6[%c0_8, %c0_9] : memref<1x128xf32, #tpu.memory_space<vmem>>, vector<1x128xf32>
    %24 = vector.broadcast %23 : vector<1x128xf32> to vector<8x128xf32>
    %25 = arith.addf %22, %24 : vector<8x128xf32>
    %26 = arith.truncf %25 : vector<8x128xf32> to vector<8x128xbf16>
    %c0_10 = arith.constant 0 : index
    %c0_11 = arith.constant 0 : index
    %27 = vector.load %arg7[%c0_10, %c0_11] : memref<512x16xbf16, #tpu.memory_space<vmem>>, vector<128x16xbf16>
    %cst_12 = arith.constant dense<0.000000e+00> : vector<8x16xf32>
    %28 = tpu.matmul %26, %27, %cst_12 {dimension_numbers = #tpu.dot_dimension_numbers<[1], [0], [0], [1], [0, 0, 1, 1], [], []>} : vector<8x128xbf16>, vector<128x16xbf16>, vector<8x16xf32> -> vector<8x16xf32>
    %c128 = arith.constant 128 : index
    %c0_13 = arith.constant 0 : index
    %29 = vector.load %arg7[%c128, %c0_13] : memref<512x16xbf16, #tpu.memory_space<vmem>>, vector<128x16xbf16>
    %cst_14 = arith.constant dense<0.000000e+00> : vector<8x16xf32>
    %30 = tpu.matmul %26, %29, %cst_14 {dimension_numbers = #tpu.dot_dimension_numbers<[1], [0], [0], [1], [0, 0, 1, 1], [], []>} : vector<8x128xbf16>, vector<128x16xbf16>, vector<8x16xf32> -> vector<8x16xf32>
    %c256 = arith.constant 256 : index
    %c0_15 = arith.constant 0 : index
    %31 = vector.load %arg7[%c256, %c0_15] : memref<512x16xbf16, #tpu.memory_space<vmem>>, vector<128x16xbf16>
    %cst_16 = arith.constant dense<0.000000e+00> : vector<8x16xf32>
    %32 = tpu.matmul %26, %31, %cst_16 {dimension_numbers = #tpu.dot_dimension_numbers<[1], [0], [0], [1], [0, 0, 1, 1], [], []>} : vector<8x128xbf16>, vector<128x16xbf16>, vector<8x16xf32> -> vector<8x16xf32>
    %c384 = arith.constant 384 : index
    %c0_17 = arith.constant 0 : index
    %33 = vector.load %arg7[%c384, %c0_17] : memref<512x16xbf16, #tpu.memory_space<vmem>>, vector<128x16xbf16>
    %cst_18 = arith.constant dense<0.000000e+00> : vector<8x16xf32>
    %34 = tpu.matmul %26, %33, %cst_18 {dimension_numbers = #tpu.dot_dimension_numbers<[1], [0], [0], [1], [0, 0, 1, 1], [], []>} : vector<8x128xbf16>, vector<128x16xbf16>, vector<8x16xf32> -> vector<8x16xf32>
    %35 = tpu.concatenate %28, %30, %32, %34 in 0 : vector<8x16xf32>, vector<8x16xf32>, vector<8x16xf32>, vector<8x16xf32> -> vector<32x16xf32>
    %36 = arith.truncf %35 : vector<32x16xf32> to vector<32x16xbf16>
    %c0_19 = arith.constant 0 : index
    %c0_20 = arith.constant 0 : index
    %c0_21 = arith.constant 0 : index
    %37 = vector.load %arg3[%c0_19, %c0_20, %c0_21] : memref<1x16x8xbf16, #tpu.memory_space<vmem>>, vector<1x16x8xbf16>
    %38 = vector.shape_cast %37 : vector<1x16x8xbf16> to vector<16x8xbf16>
    %cst_22 = arith.constant dense<0.000000e+00> : vector<32x8xf32>
    %39 = tpu.matmul %36, %38, %cst_22 {dimension_numbers = #tpu.dot_dimension_numbers<[1], [0], [0], [1], [0, 0, 1, 1], [], []>} : vector<32x16xbf16>, vector<16x8xbf16>, vector<32x8xf32> -> vector<32x8xf32>
    %cst_23 = arith.constant dense<0xFF800000> : vector<32xf32>
    %40 = vector.multi_reduction <maximumf>, %39, %cst_23 [1] : vector<32x8xf32> to vector<32xf32>
    %41 = vector.shape_cast %40 : vector<32xf32> to vector<32x1xf32>
    %42 = vector.broadcast %41 : vector<32x1xf32> to vector<32x8xf32>
    %43 = arith.subf %39, %42 : vector<32x8xf32>
    %44 = math.exp %43 : vector<32x8xf32>
    %cst_24 = arith.constant dense<0.000000e+00> : vector<32xf32>
    %45 = vector.multi_reduction <add>, %44, %cst_24 [1] : vector<32x8xf32> to vector<32xf32>
    %46 = vector.shape_cast %45 : vector<32xf32> to vector<32x1xf32>
    %47 = arith.truncf %44 : vector<32x8xf32> to vector<32x8xbf16>
    %c0_25 = arith.constant 0 : index
    %c0_26 = arith.constant 0 : index
    %c0_27 = arith.constant 0 : index
    %48 = vector.load %arg4[%c0_25, %c0_26, %c0_27] : memref<1x8x16xbf16, #tpu.memory_space<vmem>>, vector<1x8x16xbf16>
    %49 = vector.shape_cast %48 : vector<1x8x16xbf16> to vector<8x16xbf16>
    %cst_28 = arith.constant dense<0.000000e+00> : vector<32x16xf32>
    %50 = tpu.matmul %47, %49, %cst_28 {dimension_numbers = #tpu.dot_dimension_numbers<[1], [0], [0], [1], [0, 0, 1, 1], [], []>} : vector<32x8xbf16>, vector<8x16xbf16>, vector<32x16xf32> -> vector<32x16xf32>
    %51 = tpu.reciprocal %46 {approx = true} : vector<32x1xf32> -> vector<32x1xf32>
    %52 = vector.broadcast %51 : vector<32x1xf32> to vector<32x16xf32>
    %53 = arith.mulf %50, %52 : vector<32x16xf32>
    %54 = arith.truncf %53 : vector<32x16xf32> to vector<32x16xbf16>
    %cst_29 = arith.constant 0.000000e+00 : f32
    %55 = vector.broadcast %cst_29 : f32 to vector<8x128xf32>
    %56 = vector.extract_strided_slice %54 {offsets = [0, 0], sizes = [8, 16], strides = [1, 1]} : vector<32x16xbf16> to vector<8x16xbf16>
    %c0_30 = arith.constant 0 : index
    %c0_31 = arith.constant 0 : index
    %57 = vector.load %arg8[%c0_30, %c0_31] : memref<64x128xbf16, #tpu.memory_space<vmem>>, vector<16x128xbf16>
    %cst_32 = arith.constant dense<0.000000e+00> : vector<8x128xf32>
    %58 = tpu.matmul %56, %57, %cst_32 {dimension_numbers = #tpu.dot_dimension_numbers<[1], [0], [0], [1], [0, 0, 1, 1], [], []>} : vector<8x16xbf16>, vector<16x128xbf16>, vector<8x128xf32> -> vector<8x128xf32>
    %59 = arith.addf %55, %58 : vector<8x128xf32>
    %60 = vector.extract_strided_slice %54 {offsets = [8, 0], sizes = [8, 16], strides = [1, 1]} : vector<32x16xbf16> to vector<8x16xbf16>
    %c16 = arith.constant 16 : index
    %c0_33 = arith.constant 0 : index
    %61 = vector.load %arg8[%c16, %c0_33] : memref<64x128xbf16, #tpu.memory_space<vmem>>, vector<16x128xbf16>
    %cst_34 = arith.constant dense<0.000000e+00> : vector<8x128xf32>
    %62 = tpu.matmul %60, %61, %cst_34 {dimension_numbers = #tpu.dot_dimension_numbers<[1], [0], [0], [1], [0, 0, 1, 1], [], []>} : vector<8x16xbf16>, vector<16x128xbf16>, vector<8x128xf32> -> vector<8x128xf32>
    %63 = arith.addf %59, %62 : vector<8x128xf32>
    %64 = vector.extract_strided_slice %54 {offsets = [16, 0], sizes = [8, 16], strides = [1, 1]} : vector<32x16xbf16> to vector<8x16xbf16>
    %c32 = arith.constant 32 : index
    %c0_35 = arith.constant 0 : index
    %65 = vector.load %arg8[%c32, %c0_35] : memref<64x128xbf16, #tpu.memory_space<vmem>>, vector<16x128xbf16>
    %cst_36 = arith.constant dense<0.000000e+00> : vector<8x128xf32>
    %66 = tpu.matmul %64, %65, %cst_36 {dimension_numbers = #tpu.dot_dimension_numbers<[1], [0], [0], [1], [0, 0, 1, 1], [], []>} : vector<8x16xbf16>, vector<16x128xbf16>, vector<8x128xf32> -> vector<8x128xf32>
    %67 = arith.addf %63, %66 : vector<8x128xf32>
    %68 = vector.extract_strided_slice %54 {offsets = [24, 0], sizes = [8, 16], strides = [1, 1]} : vector<32x16xbf16> to vector<8x16xbf16>
    %c48 = arith.constant 48 : index
    %c0_37 = arith.constant 0 : index
    %69 = vector.load %arg8[%c48, %c0_37] : memref<64x128xbf16, #tpu.memory_space<vmem>>, vector<16x128xbf16>
    %cst_38 = arith.constant dense<0.000000e+00> : vector<8x128xf32>
    %70 = tpu.matmul %68, %69, %cst_38 {dimension_numbers = #tpu.dot_dimension_numbers<[1], [0], [0], [1], [0, 0, 1, 1], [], []>} : vector<8x16xbf16>, vector<16x128xbf16>, vector<8x128xf32> -> vector<8x128xf32>
    %71 = arith.addf %67, %70 : vector<8x128xf32>
    %c0_39 = arith.constant 0 : index
    %c0_40 = arith.constant 0 : index
    %c0_41 = arith.constant 0 : index
    %72 = vector.load %arg9[%c0_39, %c0_40, %c0_41] : memref<1x8x128xf32, #tpu.memory_space<vmem>>, vector<1x8x128xf32>
    %73 = vector.shape_cast %72 : vector<1x8x128xf32> to vector<8x128xf32>
    %74 = vector.shape_cast %71 : vector<8x128xf32> to vector<1x8x128xf32>
    tpu.vector_store %arg9[%c0_39, %c0_40, %c0_41], %74 {strides = array<i32>} : memref<1x8x128xf32, #tpu.memory_space<vmem>>, vector<1x8x128xf32>,
    return
  }
  func.func @transform_0(%arg0: i32, %arg1: i32) -> (i32, i32, i32) {
    %c0_i32 = arith.constant 0 : i32
    %c0_i32_0 = arith.constant 0 : i32
    return %arg0, %arg1, %c0_i32 : i32, i32, i32
  }
  func.func @transform_1(%arg0: i32, %arg1: i32) -> (i32, i32, i32) {
    %c0_i32 = arith.constant 0 : i32
    %c0_i32_0 = arith.constant 0 : i32
    %c0_i32_1 = arith.constant 0 : i32
    return %arg0, %c0_i32, %c0_i32_0 : i32, i32, i32
  }
  func.func @transform_2(%arg0: i32, %arg1: i32) -> (i32, i32, i32) {
    %c0_i32 = arith.constant 0 : i32
    %c0_i32_0 = arith.constant 0 : i32
    %c0_i32_1 = arith.constant 0 : i32
    return %arg0, %c0_i32, %c0_i32_0 : i32, i32, i32
  }
  func.func @transform_3(%arg0: i32, %arg1: i32) -> (i32, i32) {
    %c0_i32 = arith.constant 0 : i32
    %c0_i32_0 = arith.constant 0 : i32
    %c0_i32_1 = arith.constant 0 : i32
    return %c0_i32, %c0_i32_0 : i32, i32
  }
  func.func @transform_4(%arg0: i32, %arg1: i32) -> (i32, i32) {
    %c0_i32 = arith.constant 0 : i32
    %c0_i32_0 = arith.constant 0 : i32
    %c0_i32_1 = arith.constant 0 : i32
    return %c0_i32, %c0_i32_0 : i32, i32
  }
  func.func @transform_5(%arg0: i32, %arg1: i32) -> (i32, i32) {
    %c0_i32 = arith.constant 0 : i32
    %c0_i32_0 = arith.constant 0 : i32
    %c0_i32_1 = arith.constant 0 : i32
    return %c0_i32, %c0_i32_0 : i32, i32
  }
  func.func @transform_6(%arg0: i32, %arg1: i32) -> (i32, i32) {
    %c0_i32 = arith.constant 0 : i32
    %c0_i32_0 = arith.constant 0 : i32
    %c0_i32_1 = arith.constant 0 : i32
    return %c0_i32, %c0_i32_0 : i32, i32
  }
  func.func @transform_7(%arg0: i32, %arg1: i32) -> (i32, i32, i32) {
    %c0_i32 = arith.constant 0 : i32
    %c0_i32_0 = arith.constant 0 : i32
    return %arg0, %arg1, %c0_i32 : i32, i32, i32
  }
}

module attributes {stable_mosaic.version = 11 : i64} {
  func.func @_cross_attn_kernel(%arg0: i32, %arg1: i32, %arg2: memref<1x8x128xf32, #tpu.memory_space<vmem>>, %arg3: memref<1x16x8xbf16, #tpu.memory_space<vmem>>, %arg4: memref<1x8x16xbf16, #tpu.memory_space<vmem>>, %arg5: memref<1x128xf32, #tpu.memory_space<vmem>>, %arg6: memref<1x128xf32, #tpu.memory_space<vmem>>, %arg7: memref<512x16xbf16, #tpu.memory_space<vmem>>, %arg8: memref<64x128xbf16, #tpu.memory_space<vmem>>, %arg9: memref<1x8x128xf32, #tpu.memory_space<vmem>>) attributes {dimension_semantics = [#tpu.dimension_semantics<parallel>, #tpu.dimension_semantics<parallel>], iteration_bounds = array<i64: 2, 1>, scalar_prefetch = 0 : i64, scratch_operands = 0 : i64, tpu.core_type = #tpu.core_type<tc>, window_params = [{transform_indices = @transform_0, window_bounds = array<i64: 1, 8, 128>}, {transform_indices = @transform_1, window_bounds = array<i64: 1, 16, 8>}, {transform_indices = @transform_2, window_bounds = array<i64: 1, 8, 16>}, {pipeline_mode = #tpu.pipeline_mode<synchronous>, transform_indices = @transform_3, window_bounds = array<i64: 1, 128>}, {pipeline_mode = #tpu.pipeline_mode<synchronous>, transform_indices = @transform_4, window_bounds = array<i64: 1, 128>}, {pipeline_mode = #tpu.pipeline_mode<synchronous>, transform_indices = @transform_5, window_bounds = array<i64: 512, 16>}, {pipeline_mode = #tpu.pipeline_mode<synchronous>, transform_indices = @transform_6, window_bounds = array<i64: 64, 128>}, {transform_indices = @transform_7, window_bounds = array<i64: 1, 8, 128>}]} {
    %c0 = arith.constant 0 : index
    %c0_0 = arith.constant 0 : index
    %c0_1 = arith.constant 0 : index
    %0 = vector.load %arg2[%c0, %c0_0, %c0_1] : memref<1x8x128xf32, #tpu.memory_space<vmem>>, vector<1x8x128xf32>
    %1 = vector.shape_cast %0 : vector<1x8x128xf32> to vector<8x128xf32>
    %cst = arith.constant dense<0.000000e+00> : vector<8xf32>
    %2 = vector.multi_reduction <add>, %1, %cst [1] : vector<8x128xf32> to vector<8xf32>
    %3 = vector.shape_cast %2 : vector<8xf32> to vector<8x1xf32>
    %cst_2 = arith.constant 3.125000e-02 : f32
    %4 = vector.broadcast %cst_2 : f32 to vector<8x1xf32>
    %5 = arith.mulf %3, %4 : vector<8x1xf32>
    %6 = arith.mulf %1, %1 : vector<8x128xf32>
    %cst_3 = arith.constant dense<0.000000e+00> : vector<8xf32>
    %7 = vector.multi_reduction <add>, %6, %cst_3 [1] : vector<8x128xf32> to vector<8xf32>
    %8 = vector.shape_cast %7 : vector<8xf32> to vector<8x1xf32>
    %cst_4 = arith.constant 3.125000e-02 : f32
    %9 = vector.broadcast %cst_4 : f32 to vector<8x1xf32>
    %10 = arith.mulf %8, %9 : vector<8x1xf32>
    %11 = arith.mulf %5, %5 : vector<8x1xf32>
    %12 = arith.subf %10, %11 : vector<8x1xf32>
    %13 = vector.broadcast %5 : vector<8x1xf32> to vector<8x128xf32>
    %14 = arith.subf %1, %13 : vector<8x128xf32>
    %cst_5 = arith.constant 9.99999974E-6 : f32
    %15 = vector.broadcast %cst_5 : f32 to vector<8x1xf32>
    %16 = arith.addf %12, %15 : vector<8x1xf32>
    %17 = math.rsqrt %16 : vector<8x1xf32>
    %18 = vector.broadcast %17 : vector<8x1xf32> to vector<8x128xf32>
    %19 = arith.mulf %14, %18 : vector<8x128xf32>
    %c0_6 = arith.constant 0 : index
    %c0_7 = arith.constant 0 : index
    %20 = vector.load %arg5[%c0_6, %c0_7] : memref<1x128xf32, #tpu.memory_space<vmem>>, vector<1x128xf32>
    %21 = vector.broadcast %20 : vector<1x128xf32> to vector<8x128xf32>
    %22 = arith.mulf %19, %21 : vector<8x128xf32>
    %c0_8 = arith.constant 0 : index
    %c0_9 = arith.constant 0 : index
    %23 = vector.load %arg6[%c0_8, %c0_9] : memref<1x128xf32, #tpu.memory_space<vmem>>, vector<1x128xf32>
    %24 = vector.broadcast %23 : vector<1x128xf32> to vector<8x128xf32>
    %25 = arith.addf %22, %24 : vector<8x128xf32>
    %26 = arith.truncf %25 : vector<8x128xf32> to vector<8x128xbf16>
    %c0_10 = arith.constant 0 : index
    %c0_11 = arith.constant 0 : index
    %27 = vector.load %arg7[%c0_10, %c0_11] : memref<512x16xbf16, #tpu.memory_space<vmem>>, vector<128x16xbf16>
    %cst_12 = arith.constant dense<0.000000e+00> : vector<8x16xf32>
    %28 = tpu.matmul %26, %27, %cst_12 {dimension_numbers = #tpu.dot_dimension_numbers<[1], [0], [0], [1], [0, 0, 1, 1], [], []>} : vector<8x128xbf16>, vector<128x16xbf16>, vector<8x16xf32> -> vector<8x16xf32>
    %c128 = arith.constant 128 : index
    %c0_13 = arith.constant 0 : index
    %29 = vector.load %arg7[%c128, %c0_13] : memref<512x16xbf16, #tpu.memory_space<vmem>>, vector<128x16xbf16>
    %cst_14 = arith.constant dense<0.000000e+00> : vector<8x16xf32>
    %30 = tpu.matmul %26, %29, %cst_14 {dimension_numbers = #tpu.dot_dimension_numbers<[1], [0], [0], [1], [0, 0, 1, 1], [], []>} : vector<8x128xbf16>, vector<128x16xbf16>, vector<8x16xf32> -> vector<8x16xf32>
    %c256 = arith.constant 256 : index
    %c0_15 = arith.constant 0 : index
    %31 = vector.load %arg7[%c256, %c0_15] : memref<512x16xbf16, #tpu.memory_space<vmem>>, vector<128x16xbf16>
    %cst_16 = arith.constant dense<0.000000e+00> : vector<8x16xf32>
    %32 = tpu.matmul %26, %31, %cst_16 {dimension_numbers = #tpu.dot_dimension_numbers<[1], [0], [0], [1], [0, 0, 1, 1], [], []>} : vector<8x128xbf16>, vector<128x16xbf16>, vector<8x16xf32> -> vector<8x16xf32>
    %c384 = arith.constant 384 : index
    %c0_17 = arith.constant 0 : index
    %33 = vector.load %arg7[%c384, %c0_17] : memref<512x16xbf16, #tpu.memory_space<vmem>>, vector<128x16xbf16>
    %cst_18 = arith.constant dense<0.000000e+00> : vector<8x16xf32>
    %34 = tpu.matmul %26, %33, %cst_18 {dimension_numbers = #tpu.dot_dimension_numbers<[1], [0], [0], [1], [0, 0, 1, 1], [], []>} : vector<8x128xbf16>, vector<128x16xbf16>, vector<8x16xf32> -> vector<8x16xf32>
    %35 = tpu.concatenate %28, %30, %32, %34 in 0 : vector<8x16xf32>, vector<8x16xf32>, vector<8x16xf32>, vector<8x16xf32> -> vector<32x16xf32>
    %36 = arith.truncf %35 : vector<32x16xf32> to vector<32x16xbf16>
    %c0_19 = arith.constant 0 : index
    %c0_20 = arith.constant 0 : index
    %c0_21 = arith.constant 0 : index
    %37 = vector.load %arg3[%c0_19, %c0_20, %c0_21] : memref<1x16x8xbf16, #tpu.memory_space<vmem>>, vector<1x16x8xbf16>
    %38 = vector.shape_cast %37 : vector<1x16x8xbf16> to vector<16x8xbf16>
    %cst_22 = arith.constant dense<0.000000e+00> : vector<32x8xf32>
    %39 = tpu.matmul %36, %38, %cst_22 {dimension_numbers = #tpu.dot_dimension_numbers<[1], [0], [0], [1], [0, 0, 1, 1], [], []>} : vector<32x16xbf16>, vector<16x8xbf16>, vector<32x8xf32> -> vector<32x8xf32>
    %cst_23 = arith.constant dense<0xFF800000> : vector<32xf32>
    %40 = vector.multi_reduction <maximumf>, %39, %cst_23 [1] : vector<32x8xf32> to vector<32xf32>
    %41 = vector.shape_cast %40 : vector<32xf32> to vector<32x1xf32>
    %42 = vector.broadcast %41 : vector<32x1xf32> to vector<32x8xf32>
    %43 = arith.subf %39, %42 : vector<32x8xf32>
    %44 = math.exp %43 : vector<32x8xf32>
    %cst_24 = arith.constant dense<0.000000e+00> : vector<32xf32>
    %45 = vector.multi_reduction <add>, %44, %cst_24 [1] : vector<32x8xf32> to vector<32xf32>
    %46 = vector.shape_cast %45 : vector<32xf32> to vector<32x1xf32>
    %47 = arith.truncf %44 : vector<32x8xf32> to vector<32x8xbf16>
    %c0_25 = arith.constant 0 : index
    %c0_26 = arith.constant 0 : index
    %c0_27 = arith.constant 0 : index
    %48 = vector.load %arg4[%c0_25, %c0_26, %c0_27] : memref<1x8x16xbf16, #tpu.memory_space<vmem>>, vector<1x8x16xbf16>
    %49 = vector.shape_cast %48 : vector<1x8x16xbf16> to vector<8x16xbf16>
    %cst_28 = arith.constant dense<0.000000e+00> : vector<32x16xf32>
    %50 = tpu.matmul %47, %49, %cst_28 {dimension_numbers = #tpu.dot_dimension_numbers<[1], [0], [0], [1], [0, 0, 1, 1], [], []>} : vector<32x8xbf16>, vector<8x16xbf16>, vector<32x16xf32> -> vector<32x16xf32>
    %51 = tpu.reciprocal %46 {approx = true} : vector<32x1xf32> -> vector<32x1xf32>
    %52 = vector.broadcast %51 : vector<32x1xf32> to vector<32x16xf32>
    %53 = arith.mulf %50, %52 : vector<32x16xf32>
    %54 = arith.truncf %53 : vector<32x16xf32> to vector<32x16xbf16>
    %cst_29 = arith.constant 0.000000e+00 : f32
    %55 = vector.broadcast %cst_29 : f32 to vector<8x128xf32>
    %56 = vector.extract_strided_slice %54 {offsets = [0, 0], sizes = [8, 16], strides = [1, 1]} : vector<32x16xbf16> to vector<8x16xbf16>
    %c0_30 = arith.constant 0 : index
    %c0_31 = arith.constant 0 : index
    %57 = vector.load %arg8[%c0_30, %c0_31] : memref<64x128xbf16, #tpu.memory_space<vmem>>, vector<16x128xbf16>
    %cst_32 = arith.constant dense<0.000000e+00> : vector<8x128xf32>
    %58 = tpu.matmul %56, %57, %cst_32 {dimension_numbers = #tpu.dot_dimension_numbers<[1], [0], [0], [1], [0, 0, 1, 1], [], []>} : vector<8x16xbf16>, vector<16x128xbf16>, vector<8x128xf32> -> vector<8x128xf32>
    %59 = arith.addf %55, %58 : vector<8x128xf32>
    %60 = vector.extract_strided_slice %54 {offsets = [8, 0], sizes = [8, 16], strides = [1, 1]} : vector<32x16xbf16> to vector<8x16xbf16>
    %c16 = arith.constant 16 : index
    %c0_33 = arith.constant 0 : index
    %61 = vector.load %arg8[%c16, %c0_33] : memref<64x128xbf16, #tpu.memory_space<vmem>>, vector<16x128xbf16>
    %cst_34 = arith.constant dense<0.000000e+00> : vector<8x128xf32>
    %62 = tpu.matmul %60, %61, %cst_34 {dimension_numbers = #tpu.dot_dimension_numbers<[1], [0], [0], [1], [0, 0, 1, 1], [], []>} : vector<8x16xbf16>, vector<16x128xbf16>, vector<8x128xf32> -> vector<8x128xf32>
    %63 = arith.addf %59, %62 : vector<8x128xf32>
    %64 = vector.extract_strided_slice %54 {offsets = [16, 0], sizes = [8, 16], strides = [1, 1]} : vector<32x16xbf16> to vector<8x16xbf16>
    %c32 = arith.constant 32 : index
    %c0_35 = arith.constant 0 : index
    %65 = vector.load %arg8[%c32, %c0_35] : memref<64x128xbf16, #tpu.memory_space<vmem>>, vector<16x128xbf16>
    %cst_36 = arith.constant dense<0.000000e+00> : vector<8x128xf32>
    %66 = tpu.matmul %64, %65, %cst_36 {dimension_numbers = #tpu.dot_dimension_numbers<[1], [0], [0], [1], [0, 0, 1, 1], [], []>} : vector<8x16xbf16>, vector<16x128xbf16>, vector<8x128xf32> -> vector<8x128xf32>
    %67 = arith.addf %63, %66 : vector<8x128xf32>
    %68 = vector.extract_strided_slice %54 {offsets = [24, 0], sizes = [8, 16], strides = [1, 1]} : vector<32x16xbf16> to vector<8x16xbf16>
    %c48 = arith.constant 48 : index
    %c0_37 = arith.constant 0 : index
    %69 = vector.load %arg8[%c48, %c0_37] : memref<64x128xbf16, #tpu.memory_space<vmem>>, vector<16x128xbf16>
    %cst_38 = arith.constant dense<0.000000e+00> : vector<8x128xf32>
    %70 = tpu.matmul %68, %69, %cst_38 {dimension_numbers = #tpu.dot_dimension_numbers<[1], [0], [0], [1], [0, 0, 1, 1], [], []>} : vector<8x16xbf16>, vector<16x128xbf16>, vector<8x128xf32> -> vector<8x128xf32>
    %71 = arith.addf %67, %70 : vector<8x128xf32>
    %c0_39 = arith.constant 0 : index
    %c0_40 = arith.constant 0 : index
    %c0_41 = arith.constant 0 : index
    %72 = vector.load %arg9[%c0_39, %c0_40, %c0_41] : memref<1x8x128xf32, #tpu.memory_space<vmem>>, vector<1x8x128xf32>
    %73 = vector.shape_cast %72 : vector<1x8x128xf32> to vector<8x128xf32>
    %74 = vector.shape_cast %71 : vector<8x128xf32> to vector<1x8x128xf32>
    tpu.vector_store %arg9[%c0_39, %c0_40, %c0_41], %74 {strides = array<i32>} : memref<1x8x128xf32, #tpu.memory_space<vmem>>, vector<1x8x128xf32>,
    return
  }
  func.func @transform_0(%arg0: i32, %arg1: i32) -> (i32, i32, i32) {
    %c0_i32 = arith.constant 0 : i32
    %c0_i32_0 = arith.constant 0 : i32
    return %arg0, %arg1, %c0_i32 : i32, i32, i32
  }
  func.func @transform_1(%arg0: i32, %arg1: i32) -> (i32, i32, i32) {
    %c0_i32 = arith.constant 0 : i32
    %c0_i32_0 = arith.constant 0 : i32
    %c0_i32_1 = arith.constant 0 : i32
    return %arg0, %c0_i32, %c0_i32_0 : i32, i32, i32
  }
  func.func @transform_2(%arg0: i32, %arg1: i32) -> (i32, i32, i32) {
    %c0_i32 = arith.constant 0 : i32
    %c0_i32_0 = arith.constant 0 : i32
    %c0_i32_1 = arith.constant 0 : i32
    return %arg0, %c0_i32, %c0_i32_0 : i32, i32, i32
  }
  func.func @transform_3(%arg0: i32, %arg1: i32) -> (i32, i32) {
    %c0_i32 = arith.constant 0 : i32
    %c0_i32_0 = arith.constant 0 : i32
    %c0_i32_1 = arith.constant 0 : i32
    return %c0_i32, %c0_i32_0 : i32, i32
  }
  func.func @transform_4(%arg0: i32, %arg1: i32) -> (i32, i32) {
    %c0_i32 = arith.constant 0 : i32
    %c0_i32_0 = arith.constant 0 : i32
    %c0_i32_1 = arith.constant 0 : i32
    return %c0_i32, %c0_i32_0 : i32, i32
  }
  func.func @transform_5(%arg0: i32, %arg1: i32) -> (i32, i32) {
    %c0_i32 = arith.constant 0 : i32
    %c0_i32_0 = arith.constant 0 : i32
    %c0_i32_1 = arith.constant 0 : i32
    return %c0_i32, %c0_i32_0 : i32, i32
  }
  func.func @transform_6(%arg0: i32, %arg1: i32) -> (i32, i32) {
    %c0_i32 = arith.constant 0 : i32
    %c0_i32_0 = arith.constant 0 : i32
    %c0_i32_1 = arith.constant 0 : i32
    return %c0_i32, %c0_i32_0 : i32, i32
  }
  func.func @transform_7(%arg0: i32, %arg1: i32) -> (i32, i32, i32) {
    %c0_i32 = arith.constant 0 : i32
    %c0_i32_0 = arith.constant 0 : i32
    return %arg0, %arg1, %c0_i32 : i32, i32, i32
  }
}

</mosaic_0001>

<llo_original>
// kernel: tpu_custom_call.1
$region0: #{tpu_custom_call.1}
  #allocation0 [shape = 'u32[]', space=smem, size = 0x4, offset = 0x4, fixed_abs, tag = 'smem constant byte address 0x4 - core index']
  #allocation1 [shape = 'u32[144,128]{1,0:T(1,128)}', space=vmem, size = 0x12000, scoped, tag = 'internal scratch']
  %s0 = inlined_call_operand.vmem [shape: f32[2,8,128], index: 0, kind: input, shape index: {}]
  %s1 = inlined_call_operand.vmem [shape: bf16[2,16,8], index: 1, kind: input, shape index: {}]
  %s2 = inlined_call_operand.vmem [shape: bf16[2,8,16], index: 2, kind: input, shape index: {}]
  %s3 = inlined_call_operand.vmem [shape: f32[1,128], index: 3, kind: input, shape index: {}]
  %s4 = inlined_call_operand.vmem [shape: f32[1,128], index: 4, kind: input, shape index: {}]
  %s5 = inlined_call_operand.vmem [shape: bf16[512,16], index: 5, kind: input, shape index: {}]
  %s6 = inlined_call_operand.vmem [shape: bf16[64,128], index: 6, kind: input, shape index: {}]
  %s7 = inlined_call_operand.hbm [shape: f32[2,8,128], index: 7, kind: output, shape index: {}]
  %s8 = sld [smem:[#allocation0]]
  $region61: #{tpu_custom_call.1} parent=0
    _
  %s10 = ssub.s32 1, %s8
  %s11 = scalar_select 0, %s10, %s8
  $region1: #{tpu_custom_call.1} parent=0
    #allocation2 [shape = 'u8[8192]{0}', space=vmem, size = 0x2000, scoped, tag = 'output window, operand 0']
    #allocation3 [shape = 's32[2]{0}', space=sflag, size = 0x8, scoped, tag = 'scoped memory for tpu_custom_call.1']
    %12 = vsyncpa [#allocation3], 0
    %s13 = scalar_lea.sflag [#allocation3], 1
    %14 = vsyncpa %s13, 0
    loop: start=0, step=1, limit=4
    $region2: #{tpu_custom_call.1} parent=1 // loop_pre_header
      _
    $region3: #{tpu_custom_call.1} parent=1 // loop_header
      %s16 = sphi 0, %s20
      %p17 = scmp.ge.s32.totalorder %s16, 4
      %s23 = sphi 0, %s35
      %s24 = sphi 0, %s31
      %s25 = sphi 0, %s23
      %s26 = sphi 0, %s24
      %s27 = sphi 0, %s25
      %s28 = sphi 0, %s26
      %s40 = sphi 0, %s42
      %s43 = sphi 0, %s40
      %s44 = sphi 0, %s43
      %s60 = sphi 0, %s44
      %s66 = sphi 0, %s68
      %s69 = sphi 0, %s66
      %s70 = sphi 0, %s69
      %s86 = sphi 0, %s70
      %s92 = sphi 0, %s94
      %s95 = sphi 0, %s92
      %s96 = sphi 0, %s95
      %s112 = sphi 0, %s96
      %s116 = sphi 0, %s116
      %s118 = sphi 0, %s116
      %s119 = sphi 0, %s118
      %s133 = sphi 0, %s119
      %s137 = sphi 0, %s137
      %s139 = sphi 0, %s137
      %s140 = sphi 0, %s139
      %s154 = sphi 0, %s140
      %s158 = sphi 0, %s158
      %s160 = sphi 0, %s158
      %s161 = sphi 0, %s160
      %s175 = sphi 0, %s161
      %s179 = sphi 0, %s179
      %s181 = sphi 0, %s179
      %s182 = sphi 0, %s181
      %s196 = sphi 0, %s182
      %s204 = sphi 0, %s206
      %s207 = sphi 0, %s204
      %s208 = sphi 0, %s207
      %s224 = sphi 0, %s208
    $region4: #{tpu_custom_call.1} parent=1 // loop_header_branch
      %19 = sbr.rel (%p17) target = $region8
    $region5: #{tpu_custom_call.1} parent=1 // loop_body
      %s21 = ssub.s32 %s16, 1
      %s22 = ssub.s32 %s16, 2
      %s29 = sadd.s32 1, %s24
      %p30 = scmp.ge.s32.totalorder %s29, 1
      %s31 = scalar_select %p30, 0, %s29
      %s32 = sadd.s32 1, %s23
      %s33 = scalar_select %p30, %s32, %s23
      %p34 = scmp.ge.s32.totalorder %s33, 2
      %s35 = scalar_select %p34, 0, %s33
      %s36 = ssub.s32 %s23, %s35
      %s37 = ssub.s32 %s24, %s31
      %s38 = sor.u32 %s36, %s37
      %p39 = scmp.eq.s32.totalorder %s38, 0
      %s41 = sadd.s32 %s40, 1
      %s42 = scalar_select %p39, %s40, %s41
      %p45 = pneg %p39
      %p46 = scmp.eq.s32.totalorder %s16, 1
      %p47 = por %p45, %p46
      %p48 = scmp.ne.s32.totalorder %s40, %s43
      %p49 = scmp.eq.s32.totalorder %s16, 0
      %p50 = por %p48, %p49
      %p51 = scmp.ne.s32.totalorder %s40, %s43
      %p52 = scmp.eq.s32.totalorder %s21, 1
      %p53 = por %p51, %p52
      %p54 = scmp.ne.s32.totalorder %s43, %s44
      %p55 = scmp.eq.s32.totalorder %s21, 0
      %p56 = por %p54, %p55
      %p57 = scmp.ne.s32.totalorder %s43, %s44
      %p58 = scmp.eq.s32.totalorder %s22, 1
      %p59 = por %p57, %p58
      %p61 = scmp.ne.s32.totalorder %s44, %s60
      %p62 = scmp.eq.s32.totalorder %s22, 0
      %p63 = por %p61, %p62
      %s64 = ssub.s32 %s23, %s35
      %p65 = scmp.eq.s32.totalorder %s64, 0
      %s67 = sadd.s32 %s66, 1
      %s68 = scalar_select %p65, %s66, %s67
      %p71 = pneg %p65
      %p72 = scmp.eq.s32.totalorder %s16, 1
      %p73 = por %p71, %p72
      %p74 = scmp.ne.s32.totalorder %s66, %s69
      %p75 = scmp.eq.s32.totalorder %s16, 0
      %p76 = por %p74, %p75
      %p77 = scmp.ne.s32.totalorder %s66, %s69
      %p78 = scmp.eq.s32.totalorder %s21, 1
      %p79 = por %p77, %p78
      %p80 = scmp.ne.s32.totalorder %s69, %s70
      %p81 = scmp.eq.s32.totalorder %s21, 0
      %p82 = por %p80, %p81
      %p83 = scmp.ne.s32.totalorder %s69, %s70
      %p84 = scmp.eq.s32.totalorder %s22, 1
      %p85 = por %p83, %p84
      %p87 = scmp.ne.s32.totalorder %s70, %s86
      %p88 = scmp.eq.s32.totalorder %s22, 0
      %p89 = por %p87, %p88
      %s90 = ssub.s32 %s23, %s35
      %p91 = scmp.eq.s32.totalorder %s90, 0
      %s93 = sadd.s32 %s92, 1
      %s94 = scalar_select %p91, %s92, %s93
      %p97 = pneg %p91
      %p98 = scmp.eq.s32.totalorder %s16, 1
      %p99 = por %p97, %p98
      %p100 = scmp.ne.s32.totalorder %s92, %s95
      %p101 = scmp.eq.s32.totalorder %s16, 0
      %p102 = por %p100, %p101
      %p103 = scmp.ne.s32.totalorder %s92, %s95
      %p104 = scmp.eq.s32.totalorder %s21, 1
      %p105 = por %p103, %p104
      %p106 = scmp.ne.s32.totalorder %s95, %s96
      %p107 = scmp.eq.s32.totalorder %s21, 0
      %p108 = por %p106, %p107
      %p109 = scmp.ne.s32.totalorder %s95, %s96
      %p110 = scmp.eq.s32.totalorder %s22, 1
      %p111 = por %p109, %p110
      %p113 = scmp.ne.s32.totalorder %s96, %s112
      %p114 = scmp.eq.s32.totalorder %s22, 0
      %p115 = por %p113, %p114
      %s117 = sadd.s32 %s116, 1
      %p120 = scmp.eq.s32.totalorder %s16, 1
      %p121 = scmp.ne.s32.totalorder %s116, %s118
      %p122 = scmp.eq.s32.totalorder %s16, 0
      %p123 = por %p121, %p122
      %p124 = scmp.ne.s32.totalorder %s116, %s118
      %p125 = scmp.eq.s32.totalorder %s21, 1
      %p126 = por %p124, %p125
      %p127 = scmp.ne.s32.totalorder %s118, %s119
      %p128 = scmp.eq.s32.totalorder %s21, 0
      %p129 = por %p127, %p128
      %p130 = scmp.ne.s32.totalorder %s118, %s119
      %p131 = scmp.eq.s32.totalorder %s22, 1
      %p132 = por %p130, %p131
      %p134 = scmp.ne.s32.totalorder %s119, %s133
      %p135 = scmp.eq.s32.totalorder %s22, 0
      %p136 = por %p134, %p135
      %s138 = sadd.s32 %s137, 1
      %p141 = scmp.eq.s32.totalorder %s16, 1
      %p142 = scmp.ne.s32.totalorder %s137, %s139
      %p143 = scmp.eq.s32.totalorder %s16, 0
      %p144 = por %p142, %p143
      %p145 = scmp.ne.s32.totalorder %s137, %s139
      %p146 = scmp.eq.s32.totalorder %s21, 1
      %p147 = por %p145, %p146
      %p148 = scmp.ne.s32.totalorder %s139, %s140
      %p149 = scmp.eq.s32.totalorder %s21, 0
      %p150 = por %p148, %p149
      %p151 = scmp.ne.s32.totalorder %s139, %s140
      %p152 = scmp.eq.s32.totalorder %s22, 1
      %p153 = por %p151, %p152
      %p155 = scmp.ne.s32.totalorder %s140, %s154
      %p156 = scmp.eq.s32.totalorder %s22, 0
      %p157 = por %p155, %p156
      %s159 = sadd.s32 %s158, 1
      %p162 = scmp.eq.s32.totalorder %s16, 1
      %p163 = scmp.ne.s32.totalorder %s158, %s160
      %p164 = scmp.eq.s32.totalorder %s16, 0
      %p165 = por %p163, %p164
      %p166 = scmp.ne.s32.totalorder %s158, %s160
      %p167 = scmp.eq.s32.totalorder %s21, 1
      %p168 = por %p166, %p167
      %p169 = scmp.ne.s32.totalorder %s160, %s161
      %p170 = scmp.eq.s32.totalorder %s21, 0
      %p171 = por %p169, %p170
      %p172 = scmp.ne.s32.totalorder %s160, %s161
      %p173 = scmp.eq.s32.totalorder %s22, 1
      %p174 = por %p172, %p173
      %p176 = scmp.ne.s32.totalorder %s161, %s175
      %p177 = scmp.eq.s32.totalorder %s22, 0
      %p178 = por %p176, %p177
      %s180 = sadd.s32 %s179, 1
      %p183 = scmp.eq.s32.totalorder %s16, 1
      %p184 = scmp.ne.s32.totalorder %s179, %s181
      %p185 = scmp.eq.s32.totalorder %s16, 0
      %p186 = por %p184, %p185
      %p187 = scmp.ne.s32.totalorder %s179, %s181
      %p188 = scmp.eq.s32.totalorder %s21, 1
      %p189 = por %p187, %p188
      %p190 = scmp.ne.s32.totalorder %s181, %s182
      %p191 = scmp.eq.s32.totalorder %s21, 0
      %p192 = por %p190, %p191
      %p193 = scmp.ne.s32.totalorder %s181, %s182
      %p194 = scmp.eq.s32.totalorder %s22, 1
      %p195 = por %p193, %p194
      %p197 = scmp.ne.s32.totalorder %s182, %s196
      %p198 = scmp.eq.s32.totalorder %s22, 0
      %p199 = por %p197, %p198
      %s200 = ssub.s32 %s23, %s35
      %s201 = ssub.s32 %s24, %s31
      %s202 = sor.u32 %s200, %s201
      %p203 = scmp.eq.s32.totalorder %s202, 0
      %s205 = sadd.s32 %s204, 1
      %s206 = scalar_select %p203, %s204, %s205
      %p209 = pneg %p203
      %p210 = scmp.eq.s32.totalorder %s16, 1
      %p211 = por %p209, %p210
      %p212 = scmp.ne.s32.totalorder %s204, %s207
      %p213 = scmp.eq.s32.totalorder %s16, 0
      %p214 = por %p212, %p213
      %p215 = scmp.ne.s32.totalorder %s204, %s207
      %p216 = scmp.eq.s32.totalorder %s21, 1
      %p217 = por %p215, %p216
      %p218 = scmp.ne.s32.totalorder %s207, %s208
      %p219 = scmp.eq.s32.totalorder %s21, 0
      %p220 = por %p218, %p219
      %p221 = scmp.ne.s32.totalorder %s207, %s208
      %p222 = scmp.eq.s32.totalorder %s22, 1
      %p223 = por %p221, %p222
      %p225 = scmp.ne.s32.totalorder %s208, %s224
      %p226 = scmp.eq.s32.totalorder %s22, 0
      %p227 = por %p225, %p226
      %p228 = scmp.le.s32.totalorder 1, %s16
      %p229 = scmp.lt.s32.totalorder %s16, 3
      %p230 = pnand %p228, %p229
      %p231 = pneg %p230
      // Predicated region
      $region9: #{tpu_custom_call.1} parent=5 // pred_check
        _
      $region10: #{tpu_custom_call.1} parent=5 // pred_check_branch
        %233 = sbr.rel (%p230) target = $region12
      $region11: #{tpu_custom_call.1} parent=5 // pred_region
        %s234 = ssub.s32 %s16, 1
        // Predicated region
        $region13: #{tpu_custom_call.1} parent=11 // pred_check
          %p235 = pneg %p129
        $region14: #{tpu_custom_call.1} parent=11 // pred_check_branch
          %237 = sbr.rel (%p235) target = $region16
        $region15: #{tpu_custom_call.1} parent=11 // pred_region
          _
        $region16: #{tpu_custom_call.1} parent=11 // pred_fallthru
          _
        // Predicated region
        $region17: #{tpu_custom_call.1} parent=11 // pred_check
          %p238 = pneg %p150
        $region18: #{tpu_custom_call.1} parent=11 // pred_check_branch
          %240 = sbr.rel (%p238) target = $region20
        $region19: #{tpu_custom_call.1} parent=11 // pred_region
          _
        $region20: #{tpu_custom_call.1} parent=11 // pred_fallthru
          _
        // Predicated region
        $region21: #{tpu_custom_call.1} parent=11 // pred_check
          %p241 = pneg %p171
        $region22: #{tpu_custom_call.1} parent=11 // pred_check_branch
          %243 = sbr.rel (%p241) target = $region24
        $region23: #{tpu_custom_call.1} parent=11 // pred_region
          _
        $region24: #{tpu_custom_call.1} parent=11 // pred_fallthru
          _
        // Predicated region
        $region25: #{tpu_custom_call.1} parent=11 // pred_check
          %p244 = pneg %p192
        $region26: #{tpu_custom_call.1} parent=11 // pred_check_branch
          %246 = sbr.rel (%p244) target = $region28
        $region27: #{tpu_custom_call.1} parent=11 // pred_region
          _
        $region28: #{tpu_custom_call.1} parent=11 // pred_fallthru
          _
      $region12: #{tpu_custom_call.1} parent=5 // pred_fallthru
        _
      %p247 = scmp.lt.s32.totalorder %s16, 2
      // Predicated region
      $region29: #{tpu_custom_call.1} parent=5 // pred_check
        %p248 = pneg %p247
      $region30: #{tpu_custom_call.1} parent=5 // pred_check_branch
        %250 = sbr.rel (%p248) target = $region32
      $region31: #{tpu_custom_call.1} parent=5 // pred_region
        // Predicated region
        $region33: #{tpu_custom_call.1} parent=31 // pred_check
          %p251 = pneg %p50
        $region34: #{tpu_custom_call.1} parent=31 // pred_check_branch
          %253 = sbr.rel (%p251) target = $region36
        $region35: #{tpu_custom_call.1} parent=31 // pred_region
          %p254 = scmp.lt.s32.totalorder %s23, 1
          %s255 = scalar_select %p254, %s23, 1
          %p256 = scmp.lt.s32.totalorder %s24, 0
          %s257 = scalar_select %p256, %s24, 0
          %s258 = sadd.s32 %s257, %s255
          %s259 = smul.addr %s258, 8
          %s260 = scalar_lea.vmem %s0, %s259
        $region36: #{tpu_custom_call.1} parent=31 // pred_fallthru
          _
        // Predicated region
        $region37: #{tpu_custom_call.1} parent=31 // pred_check
          %p261 = pneg %p76
        $region38: #{tpu_custom_call.1} parent=31 // pred_check_branch
          %263 = sbr.rel (%p261) target = $region40
        $region39: #{tpu_custom_call.1} parent=31 // pred_region
          %p264 = scmp.lt.s32.totalorder %s23, 1
          %s265 = scalar_select %p264, %s23, 1
          %s266 = smul.addr %s265, 2
          %s267 = smul.addr %s266, 4
          %s268 = scalar_lea.vmem %s1, %s267
        $region40: #{tpu_custom_call.1} parent=31 // pred_fallthru
          _
        // Predicated region
        $region41: #{tpu_custom_call.1} parent=31 // pred_check
          %p269 = pneg %p102
        $region42: #{tpu_custom_call.1} parent=31 // pred_check_branch
          %271 = sbr.rel (%p269) target = $region44
        $region43: #{tpu_custom_call.1} parent=31 // pred_region
          %p272 = scmp.lt.s32.totalorder %s23, 1
          %s273 = scalar_select %p272, %s23, 1
          %s274 = smul.addr %s273, 4
          %s275 = scalar_lea.vmem %s2, %s274
        $region44: #{tpu_custom_call.1} parent=31 // pred_fallthru
          _
      $region32: #{tpu_custom_call.1} parent=5 // pred_fallthru
        _
      %p276 = scmp.le.s32.totalorder 1, %s16
      %p277 = scmp.lt.s32.totalorder %s16, 3
      %p278 = pnand %p276, %p277
      %p279 = pneg %p278
      // Predicated region
      $region45: #{tpu_custom_call.1} parent=5 // pred_check
        _
      $region46: #{tpu_custom_call.1} parent=5 // pred_check_branch
        %281 = sbr.rel (%p278) target = $region48
      $region47: #{tpu_custom_call.1} parent=5 // pred_region
        %s282 = ssub.s32 %s16, 1
        %p283 = scmp.lt.s32.totalorder %s25, 1
        %s284 = scalar_select %p283, %s25, 1
        %p285 = scmp.lt.s32.totalorder %s26, 0
        %s286 = scalar_select %p285, %s26, 0
        %s287 = sadd.s32 %s286, %s284
        %s288 = smul.addr %s287, 8
        %s289 = scalar_lea.vmem %s0, %s288
        %p290 = pneg %p56
        %p291 = pneg %p53
        %p292 = scmp.lt.s32.totalorder %s25, 1
        %s293 = scalar_select %p292, %s25, 1
        %s294 = smul.addr %s293, 2
        %s295 = smul.addr %s294, 4
        %s296 = scalar_lea.vmem %s1, %s295
        %p297 = pneg %p82
        %p298 = pneg %p79
        %p299 = scmp.lt.s32.totalorder %s25, 1
        %s300 = scalar_select %p299, %s25, 1
        %s301 = smul.addr %s300, 4
        %s302 = scalar_lea.vmem %s2, %s301
        %p303 = pneg %p108
        %p304 = pneg %p105
        %p305 = pneg %p129
        %p306 = pneg %p126
        %p307 = pneg %p150
        %p308 = pneg %p147
        %p309 = pneg %p171
        %p310 = pneg %p168
        %p311 = pneg %p192
        %p312 = pneg %p189
        %p313 = pneg %p220
        %p314 = pneg %p217
        %s315 = sand.u32 %s207, 1
        %s316 = scalar_lea.sflag [#allocation3], %s315
        %s317 = sand.u32 %s207, 1
        %s318 = smul.addr %s317, 8
        %s319 = scalar_lea.vmem [#allocation2], %s318
        %p320 = scmp.lt.s32.totalorder %s25, 1
        %s321 = scalar_select %p320, %s25, 1
        %p322 = scmp.lt.s32.totalorder %s26, 0
        %s323 = scalar_select %p322, %s26, 0
        %s324 = sadd.s32 %s323, %s321
        %s325 = smul.addr %s324, 8
        %s326 = scalar_lea.vmem %s0, %s325
        %p327 = scmp.lt.s32.totalorder %s25, 1
        %s328 = scalar_select %p327, %s25, 1
        %s329 = smul.addr %s328, 2
        %s330 = smul.addr %s329, 4
        %s331 = scalar_lea.vmem %s1, %s330
        %p332 = scmp.lt.s32.totalorder %s25, 1
        %s333 = scalar_select %p332, %s25, 1
        %s334 = smul.addr %s333, 4
        %s335 = scalar_lea.vmem %s2, %s334
        %v337 = vld [vmem:[%s326] sm:$0xff]
        %338 = vadd.xlane.f32.xlu0 %v337
        %v339 = vpop.xlane.xlu0 %338
        %v340 = vmul.f32 %v339, 0.03125
        %v341 = vmul.f32 %v337, %v337
        %342 = vadd.xlane.f32.xlu0 %v341
        %v343 = vpop.xlane.xlu0 %342
        %v344 = vmul.f32 %v343, 0.03125
        %v345 = vmul.f32 %v340, %v340
        %v346 = vsub.f32 %v344, %v345
        %v347 = vsub.f32 %v337, %v340
        %v348 = vadd.f32 %v346, 1e-05
        %v349 = vrsqrt.pop %v348
        %v350 = vmul.f32 %v347, %v349
        %v351 = vld [vmem:[%s3] sm:$0x1]
        %v353 = vlaneseq
        %v354 = vshrl.u32 %v353, 7
        %v355 = vsub.s32 0, %v354
        %v356 = vrot.slane %v351, %v355
        %v358 = vmul.f32 %v350, %v356
        %v359 = vld [vmem:[%s4] sm:$0x1]
        %v361 = vlaneseq
        %v362 = vshrl.u32 %v361, 7
        %v363 = vsub.s32 0, %v362
        %v364 = vrot.slane %v359, %v363
        %v366 = vadd.f32 %v358, %v364
        %v367 = vpack.c.bf16 %v366, %v366
        %v368 = vld [vmem:[%s5] sm:$0xf]
        %v369 = vld [vmem:[%s5 + $0x4] sm:$0xf]
        %v370 = vld [vmem:[%s5 + $0x8] sm:$0xf]
        %v371 = vld [vmem:[%s5 + $0xc] sm:$0xf]
        %v372 = vld [vmem:[%s5 + $0x10] sm:$0xf]
        %v373 = vld [vmem:[%s5 + $0x14] sm:$0xf]
        %v374 = vld [vmem:[%s5 + $0x18] sm:$0xf]
        %v375 = vld [vmem:[%s5 + $0x1c] sm:$0xf]
        %v376 = vld [vmem:[%s5 + $0x20] sm:$0xf]
        %v377 = vld [vmem:[%s5 + $0x24] sm:$0xf]
        %v378 = vld [vmem:[%s5 + $0x28] sm:$0xf]
        %v379 = vld [vmem:[%s5 + $0x2c] sm:$0xf]
        %v380 = vld [vmem:[%s5 + $0x30] sm:$0xf]
        %v381 = vld [vmem:[%s5 + $0x34] sm:$0xf]
        %v382 = vld [vmem:[%s5 + $0x38] sm:$0xf]
        %v383 = vld [vmem:[%s5 + $0x3c] sm:$0xf]
        %v400 = vunpack.c.l.b16 %v368
        %v401 = vunpack.c.l.b16 %v369
        %v402 = vunpack.c.l.b16 %v370
        %v403 = vunpack.c.l.b16 %v371
        %v404 = vunpack.c.l.b16 %v372
        %v405 = vunpack.c.l.b16 %v373
        %v406 = vunpack.c.l.b16 %v374
        %v407 = vunpack.c.l.b16 %v375
        %v408 = vunpack.c.l.b16 %v376
        %v409 = vunpack.c.l.b16 %v377
        %v410 = vunpack.c.l.b16 %v378
        %v411 = vunpack.c.l.b16 %v379
        %v412 = vunpack.c.l.b16 %v380
        %v413 = vunpack.c.l.b16 %v381
        %v414 = vunpack.c.l.b16 %v382
        %v415 = vunpack.c.l.b16 %v383
        %v416 = vpack.c.b16 %v401, %v400
        %v417 = vpack.c.b16 %v403, %v402
        %v418 = vpack.c.b16 %v405, %v404
        %v419 = vpack.c.b16 %v407, %v406
        %v420 = vpack.c.b16 %v409, %v408
        %v421 = vpack.c.b16 %v411, %v410
        %v422 = vpack.c.b16 %v413, %v412
        %v423 = vpack.c.b16 %v415, %v414
        %432 = vmatprep.subr.bf16.mxu0 0
        %433 = vmatpush1.bf16.msra.mxu0 %v423
        %434 = vmatprep.subr.bf16.mxu0 0
        %435 = vmatpush1.bf16.msra.mxu0 %v422
        %436 = vmatprep.subr.bf16.mxu0 0
        %437 = vmatpush1.bf16.msra.mxu0 %v421
        %438 = vmatprep.subr.bf16.mxu0 0
        %439 = vmatpush1.bf16.msra.mxu0 %v420
        %440 = vmatprep.subr.bf16.mxu0 0
        %441 = vmatpush1.bf16.msra.mxu0 %v419
        %442 = vmatprep.subr.bf16.mxu0 0
        %443 = vmatpush1.bf16.msra.mxu0 %v418
        %444 = vmatprep.subr.bf16.mxu0 0
        %445 = vmatpush1.bf16.msra.mxu0 %v417
        %446 = vmatprep.subr.bf16.mxu0 0
        %447 = vmatpush1.bf16.msra.mxu0 %v416
        %448 = vmatprep.subr.bf16.mxu0 0
        %449 = vmatpush2.bf16.msra.mxu0 0
        %450 = vmatprep.subr.bf16.mxu0 0
        %451 = vmatpush2.bf16.msra.mxu0 0
        %452 = vmatprep.subr.bf16.mxu0 0
        %453 = vmatpush2.bf16.msra.mxu0 0
        %454 = vmatprep.subr.bf16.mxu0 0
        %455 = vmatpush2.bf16.msra.mxu0 0
        %456 = vmatprep.subr.bf16.mxu0 0
        %457 = vmatpush2.bf16.msra.mxu0 0
        %458 = vmatprep.subr.bf16.mxu0 0
        %459 = vmatpush2.bf16.msra.mxu0 0
        %460 = vmatprep.subr.bf16.mxu0 0
        %461 = vmatpush2.bf16.msra.mxu0 0
        %462 = vmatprep.subr.bf16.mxu0 0
        %463 = vmatpush2.bf16.msra.mxu0 0
        %464 = vmatprep.mubr.bf16.mxu0 0
        %465 = vmatmul.mubr.bf16.gmra.mxu0 %v367
        %v466 = vpop.f32.mrf.mxu0
        %v467 = vadd.f32 0.0, %v466
        %v468 = vpop.f32.mrf.mxu0
        %v469 = vpop.f32.mrf.mxu0
        %v470 = vpop.f32.mrf.mxu0
        %471 = vdwg.mxu0
        %v472 = vld [vmem:[%s5 + $0x40] sm:$0xf]
        %v473 = vld [vmem:[%s5 + $0x44] sm:$0xf]
        %v474 = vld [vmem:[%s5 + $0x48] sm:$0xf]
        %v475 = vld [vmem:[%s5 + $0x4c] sm:$0xf]
        %v476 = vld [vmem:[%s5 + $0x50] sm:$0xf]
        %v477 = vld [vmem:[%s5 + $0x54] sm:$0xf]
        %v478 = vld [vmem:[%s5 + $0x58] sm:$0xf]
        %v479 = vld [vmem:[%s5 + $0x5c] sm:$0xf]
        %v480 = vld [vmem:[%s5 + $0x60] sm:$0xf]
        %v481 = vld [vmem:[%s5 + $0x64] sm:$0xf]
        %v482 = vld [vmem:[%s5 + $0x68] sm:$0xf]
        %v483 = vld [vmem:[%s5 + $0x6c] sm:$0xf]
        %v484 = vld [vmem:[%s5 + $0x70] sm:$0xf]
        %v485 = vld [vmem:[%s5 + $0x74] sm:$0xf]
        %v486 = vld [vmem:[%s5 + $0x78] sm:$0xf]
        %v487 = vld [vmem:[%s5 + $0x7c] sm:$0xf]
        %v504 = vunpack.c.l.b16 %v472
        %v505 = vunpack.c.l.b16 %v473
        %v506 = vunpack.c.l.b16 %v474
        %v507 = vunpack.c.l.b16 %v475
        %v508 = vunpack.c.l.b16 %v476
        %v509 = vunpack.c.l.b16 %v477
        %v510 = vunpack.c.l.b16 %v478
        %v511 = vunpack.c.l.b16 %v479
        %v512 = vunpack.c.l.b16 %v480
        %v513 = vunpack.c.l.b16 %v481
        %v514 = vunpack.c.l.b16 %v482
        %v515 = vunpack.c.l.b16 %v483
        %v516 = vunpack.c.l.b16 %v484
        %v517 = vunpack.c.l.b16 %v485
        %v518 = vunpack.c.l.b16 %v486
        %v519 = vunpack.c.l.b16 %v487
        %v520 = vpack.c.b16 %v505, %v504
        %v521 = vpack.c.b16 %v507, %v506
        %v522 = vpack.c.b16 %v509, %v508
        %v523 = vpack.c.b16 %v511, %v510
        %v524 = vpack.c.b16 %v513, %v512
        %v525 = vpack.c.b16 %v515, %v514
        %v526 = vpack.c.b16 %v517, %v516
        %v527 = vpack.c.b16 %v519, %v518
        %536 = vmatprep.subr.bf16.mxu0 0
        %537 = vmatpush1.bf16.msra.mxu0 %v527
        %538 = vmatprep.subr.bf16.mxu0 0
        %539 = vmatpush1.bf16.msra.mxu0 %v526
        %540 = vmatprep.subr.bf16.mxu0 0
        %541 = vmatpush1.bf16.msra.mxu0 %v525
        %542 = vmatprep.subr.bf16.mxu0 0
        %543 = vmatpush1.bf16.msra.mxu0 %v524
        %544 = vmatprep.subr.bf16.mxu0 0
        %545 = vmatpush1.bf16.msra.mxu0 %v523
        %546 = vmatprep.subr.bf16.mxu0 0
        %547 = vmatpush1.bf16.msra.mxu0 %v522
        %548 = vmatprep.subr.bf16.mxu0 0
        %549 = vmatpush1.bf16.msra.mxu0 %v521
        %550 = vmatprep.subr.bf16.mxu0 0
        %551 = vmatpush1.bf16.msra.mxu0 %v520
        %552 = vmatprep.subr.bf16.mxu0 0
        %553 = vmatpush2.bf16.msra.mxu0 0
        %554 = vmatprep.subr.bf16.mxu0 0
        %555 = vmatpush2.bf16.msra.mxu0 0
        %556 = vmatprep.subr.bf16.mxu0 0
        %557 = vmatpush2.bf16.msra.mxu0 0
        %558 = vmatprep.subr.bf16.mxu0 0
        %559 = vmatpush2.bf16.msra.mxu0 0
        %560 = vmatprep.subr.bf16.mxu0 0
        %561 = vmatpush2.bf16.msra.mxu0 0
        %562 = vmatprep.subr.bf16.mxu0 0
        %563 = vmatpush2.bf16.msra.mxu0 0
        %564 = vmatprep.subr.bf16.mxu0 0
        %565 = vmatpush2.bf16.msra.mxu0 0
        %566 = vmatprep.subr.bf16.mxu0 0
        %567 = vmatpush2.bf16.msra.mxu0 0
        %568 = vmatprep.mubr.bf16.mxu0 0
        %569 = vmatmul.mubr.bf16.gmra.mxu0 %v367
        %v570 = vpop.f32.mrf.mxu0
        %v571 = vadd.f32 0.0, %v570
        %v572 = vpop.f32.mrf.mxu0
        %v573 = vpop.f32.mrf.mxu0
        %v574 = vpop.f32.mrf.mxu0
        %575 = vdwg.mxu0
        %v576 = vld [vmem:[%s5 + $0x80] sm:$0xf]
        %v577 = vld [vmem:[%s5 + $0x84] sm:$0xf]
        %v578 = vld [vmem:[%s5 + $0x88] sm:$0xf]
        %v579 = vld [vmem:[%s5 + $0x8c] sm:$0xf]
        %v580 = vld [vmem:[%s5 + $0x90] sm:$0xf]
        %v581 = vld [vmem:[%s5 + $0x94] sm:$0xf]
        %v582 = vld [vmem:[%s5 + $0x98] sm:$0xf]
        %v583 = vld [vmem:[%s5 + $0x9c] sm:$0xf]
        %v584 = vld [vmem:[%s5 + $0xa0] sm:$0xf]
        %v585 = vld [vmem:[%s5 + $0xa4] sm:$0xf]
        %v586 = vld [vmem:[%s5 + $0xa8] sm:$0xf]
        %v587 = vld [vmem:[%s5 + $0xac] sm:$0xf]
        %v588 = vld [vmem:[%s5 + $0xb0] sm:$0xf]
        %v589 = vld [vmem:[%s5 + $0xb4] sm:$0xf]
        %v590 = vld [vmem:[%s5 + $0xb8] sm:$0xf]
        %v591 = vld [vmem:[%s5 + $0xbc] sm:$0xf]
        %v608 = vunpack.c.l.b16 %v576
        %v609 = vunpack.c.l.b16 %v577
        %v610 = vunpack.c.l.b16 %v578
        %v611 = vunpack.c.l.b16 %v579
        %v612 = vunpack.c.l.b16 %v580
        %v613 = vunpack.c.l.b16 %v581
        %v614 = vunpack.c.l.b16 %v582
        %v615 = vunpack.c.l.b16 %v583
        %v616 = vunpack.c.l.b16 %v584
        %v617 = vunpack.c.l.b16 %v585
        %v618 = vunpack.c.l.b16 %v586
        %v619 = vunpack.c.l.b16 %v587
        %v620 = vunpack.c.l.b16 %v588
        %v621 = vunpack.c.l.b16 %v589
        %v622 = vunpack.c.l.b16 %v590
        %v623 = vunpack.c.l.b16 %v591
        %v624 = vpack.c.b16 %v609, %v608
        %v625 = vpack.c.b16 %v611, %v610
        %v626 = vpack.c.b16 %v613, %v612
        %v627 = vpack.c.b16 %v615, %v614
        %v628 = vpack.c.b16 %v617, %v616
        %v629 = vpack.c.b16 %v619, %v618
        %v630 = vpack.c.b16 %v621, %v620
        %v631 = vpack.c.b16 %v623, %v622
        %640 = vmatprep.subr.bf16.mxu0 0
        %641 = vmatpush1.bf16.msra.mxu0 %v631
        %642 = vmatprep.subr.bf16.mxu0 0
        %643 = vmatpush1.bf16.msra.mxu0 %v630
        %644 = vmatprep.subr.bf16.mxu0 0
        %645 = vmatpush1.bf16.msra.mxu0 %v629
        %646 = vmatprep.subr.bf16.mxu0 0
        %647 = vmatpush1.bf16.msra.mxu0 %v628
        %648 = vmatprep.subr.bf16.mxu0 0
        %649 = vmatpush1.bf16.msra.mxu0 %v627
        %650 = vmatprep.subr.bf16.mxu0 0
        %651 = vmatpush1.bf16.msra.mxu0 %v626
        %652 = vmatprep.subr.bf16.mxu0 0
        %653 = vmatpush1.bf16.msra.mxu0 %v625
        %654 = vmatprep.subr.bf16.mxu0 0
        %655 = vmatpush1.bf16.msra.mxu0 %v624
        %656 = vmatprep.subr.bf16.mxu0 0
        %657 = vmatpush2.bf16.msra.mxu0 0
        %658 = vmatprep.subr.bf16.mxu0 0
        %659 = vmatpush2.bf16.msra.mxu0 0
        %660 = vmatprep.subr.bf16.mxu0 0
        %661 = vmatpush2.bf16.msra.mxu0 0
        %662 = vmatprep.subr.bf16.mxu0 0
        %663 = vmatpush2.bf16.msra.mxu0 0
        %664 = vmatprep.subr.bf16.mxu0 0
        %665 = vmatpush2.bf16.msra.mxu0 0
        %666 = vmatprep.subr.bf16.mxu0 0
        %667 = vmatpush2.bf16.msra.mxu0 0
        %668 = vmatprep.subr.bf16.mxu0 0
        %669 = vmatpush2.bf16.msra.mxu0 0
        %670 = vmatprep.subr.bf16.mxu0 0
        %671 = vmatpush2.bf16.msra.mxu0 0
        %672 = vmatprep.mubr.bf16.mxu0 0
        %673 = vmatmul.mubr.bf16.gmra.mxu0 %v367
        %v674 = vpop.f32.mrf.mxu0
        %v675 = vadd.f32 0.0, %v674
        %v676 = vpop.f32.mrf.mxu0
        %v677 = vpop.f32.mrf.mxu0
        %v678 = vpop.f32.mrf.mxu0
        %679 = vdwg.mxu0
        %v680 = vld [vmem:[%s5 + $0xc0] sm:$0xf]
        %v681 = vld [vmem:[%s5 + $0xc4] sm:$0xf]
        %v682 = vld [vmem:[%s5 + $0xc8] sm:$0xf]
        %v683 = vld [vmem:[%s5 + $0xcc] sm:$0xf]
        %v684 = vld [vmem:[%s5 + $0xd0] sm:$0xf]
        %v685 = vld [vmem:[%s5 + $0xd4] sm:$0xf]
        %v686 = vld [vmem:[%s5 + $0xd8] sm:$0xf]
        %v687 = vld [vmem:[%s5 + $0xdc] sm:$0xf]
        %v688 = vld [vmem:[%s5 + $0xe0] sm:$0xf]
        %v689 = vld [vmem:[%s5 + $0xe4] sm:$0xf]
        %v690 = vld [vmem:[%s5 + $0xe8] sm:$0xf]
        %v691 = vld [vmem:[%s5 + $0xec] sm:$0xf]
        %v692 = vld [vmem:[%s5 + $0xf0] sm:$0xf]
        %v693 = vld [vmem:[%s5 + $0xf4] sm:$0xf]
        %v694 = vld [vmem:[%s5 + $0xf8] sm:$0xf]
        %v695 = vld [vmem:[%s5 + $0xfc] sm:$0xf]
        %v712 = vunpack.c.l.b16 %v680
        %v713 = vunpack.c.l.b16 %v681
        %v714 = vunpack.c.l.b16 %v682
        %v715 = vunpack.c.l.b16 %v683
        %v716 = vunpack.c.l.b16 %v684
        %v717 = vunpack.c.l.b16 %v685
        %v718 = vunpack.c.l.b16 %v686
        %v719 = vunpack.c.l.b16 %v687
        %v720 = vunpack.c.l.b16 %v688
        %v721 = vunpack.c.l.b16 %v689
        %v722 = vunpack.c.l.b16 %v690
        %v723 = vunpack.c.l.b16 %v691
        %v724 = vunpack.c.l.b16 %v692
        %v725 = vunpack.c.l.b16 %v693
        %v726 = vunpack.c.l.b16 %v694
        %v727 = vunpack.c.l.b16 %v695
        %v728 = vpack.c.b16 %v713, %v712
        %v729 = vpack.c.b16 %v715, %v714
        %v730 = vpack.c.b16 %v717, %v716
        %v731 = vpack.c.b16 %v719, %v718
        %v732 = vpack.c.b16 %v721, %v720
        %v733 = vpack.c.b16 %v723, %v722
        %v734 = vpack.c.b16 %v725, %v724
        %v735 = vpack.c.b16 %v727, %v726
        %744 = vmatprep.subr.bf16.mxu0 0
        %745 = vmatpush1.bf16.msra.mxu0 %v735
        %746 = vmatprep.subr.bf16.mxu0 0
        %747 = vmatpush1.bf16.msra.mxu0 %v734
        %748 = vmatprep.subr.bf16.mxu0 0
        %749 = vmatpush1.bf16.msra.mxu0 %v733
        %750 = vmatprep.subr.bf16.mxu0 0
        %751 = vmatpush1.bf16.msra.mxu0 %v732
        %752 = vmatprep.subr.bf16.mxu0 0
        %753 = vmatpush1.bf16.msra.mxu0 %v731
        %754 = vmatprep.subr.bf16.mxu0 0
        %755 = vmatpush1.bf16.msra.mxu0 %v730
        %756 = vmatprep.subr.bf16.mxu0 0
        %757 = vmatpush1.bf16.msra.mxu0 %v729
        %758 = vmatprep.subr.bf16.mxu0 0
        %759 = vmatpush1.bf16.msra.mxu0 %v728
        %760 = vmatprep.subr.bf16.mxu0 0
        %761 = vmatpush2.bf16.msra.mxu0 0
        %762 = vmatprep.subr.bf16.mxu0 0
        %763 = vmatpush2.bf16.msra.mxu0 0
        %764 = vmatprep.subr.bf16.mxu0 0
        %765 = vmatpush2.bf16.msra.mxu0 0
        %766 = vmatprep.subr.bf16.mxu0 0
        %767 = vmatpush2.bf16.msra.mxu0 0
        %768 = vmatprep.subr.bf16.mxu0 0
        %769 = vmatpush2.bf16.msra.mxu0 0
        %770 = vmatprep.subr.bf16.mxu0 0
        %771 = vmatpush2.bf16.msra.mxu0 0
        %772 = vmatprep.subr.bf16.mxu0 0
        %773 = vmatpush2.bf16.msra.mxu0 0
        %774 = vmatprep.subr.bf16.mxu0 0
        %775 = vmatpush2.bf16.msra.mxu0 0
        %776 = vmatprep.mubr.bf16.mxu0 0
        %777 = vmatmul.mubr.bf16.gmra.mxu0 %v367
        %v778 = vpop.f32.mrf.mxu0
        %v779 = vadd.f32 0.0, %v778
        %v780 = vpop.f32.mrf.mxu0
        %v781 = vpop.f32.mrf.mxu0
        %v782 = vpop.f32.mrf.mxu0
        %783 = vdwg.mxu0
        %v784 = vpack.c.bf16 %v571, %v467
        %v785 = vpack.c.bf16 %v779, %v675
        %v786 = vld [vmem:[%s331] sm:$0xf]
        %v787 = vld [vmem:[%s331 + $0x4] sm:$0xf]
        %v790 = vunpack.c.l.b16 %v786
        %v791 = vunpack.c.l.b16 %v787
        %v792 = vpack.c.b16 %v791, %v790
        %vm794 = vcmask 130048
        %v796 = vsel %vm794, %v784, 0
        %v799 = vsel %vm794, %v785, 0
        %801 = vmatprep.subr.bf16.mxu0 0
        %802 = vmatpush1.bf16.msra.mxu0 0
        %803 = vmatprep.subr.bf16.mxu0 0
        %804 = vmatpush1.bf16.msra.mxu0 0
        %805 = vmatprep.subr.bf16.mxu0 0
        %806 = vmatpush1.bf16.msra.mxu0 0
        %807 = vmatprep.subr.bf16.mxu0 0
        %808 = vmatpush1.bf16.msra.mxu0 0
        %809 = vmatprep.subr.bf16.mxu0 0
        %810 = vmatpush1.bf16.msra.mxu0 0
        %811 = vmatprep.subr.bf16.mxu0 0
        %812 = vmatpush1.bf16.msra.mxu0 0
        %813 = vmatprep.subr.bf16.mxu0 0
        %814 = vmatpush1.bf16.msra.mxu0 0
        %815 = vmatprep.subr.bf16.mxu0 0
        %816 = vmatpush1.bf16.msra.mxu0 %v792
        %817 = vmatprep.subr.bf16.mxu0 0
        %818 = vmatpush2.bf16.msra.mxu0 0
        %819 = vmatprep.subr.bf16.mxu0 0
        %820 = vmatpush2.bf16.msra.mxu0 0
        %821 = vmatprep.subr.bf16.mxu0 0
        %822 = vmatpush2.bf16.msra.mxu0 0
        %823 = vmatprep.subr.bf16.mxu0 0
        %824 = vmatpush2.bf16.msra.mxu0 0
        %825 = vmatprep.subr.bf16.mxu0 0
        %826 = vmatpush2.bf16.msra.mxu0 0
        %827 = vmatprep.subr.bf16.mxu0 0
        %828 = vmatpush2.bf16.msra.mxu0 0
        %829 = vmatprep.subr.bf16.mxu0 0
        %830 = vmatpush2.bf16.msra.mxu0 0
        %831 = vmatprep.subr.bf16.mxu0 0
        %832 = vmatpush2.bf16.msra.mxu0 0
        %833 = vmatprep.mubr.bf16.mxu0 0
        %834 = vmatmul.mubr.bf16.gmra.mxu0 %v796
        %v835 = vpop.f32.mrf.mxu0
        %v836 = vadd.f32 0.0, %v835
        %v837 = vpop.f32.mrf.mxu0
        %v838 = vpop.f32.mrf.mxu0
        %v839 = vadd.f32 0.0, %v838
        %v840 = vpop.f32.mrf.mxu0
        %841 = vmatprep.mubr.bf16.mxu0 0
        %842 = vmatmul.mubr.bf16.gmra.mxu0 %v799
        %v843 = vpop.f32.mrf.mxu0
        %v844 = vadd.f32 0.0, %v843
        %v845 = vpop.f32.mrf.mxu0
        %v846 = vpop.f32.mrf.mxu0
        %v847 = vadd.f32 0.0, %v846
        %v848 = vpop.f32.mrf.mxu0
        %849 = vdwg.mxu0
        %vm850 = vcmask 64512
        %v851 = vsel %vm850, %v836, -inf
        %852 = vmax.xlane.f32.xlu0 %v851
        %v853 = vpop.xlane.xlu0 %852
        %v854 = vsel %vm850, %v839, -inf
        %855 = vmax.xlane.f32.xlu0 %v854
        %v856 = vpop.xlane.xlu0 %855
        %v857 = vsel %vm850, %v844, -inf
        %858 = vmax.xlane.f32.xlu0 %v857
        %v859 = vpop.xlane.xlu0 %858
        %v860 = vsel %vm850, %v847, -inf
        %861 = vmax.xlane.f32.xlu0 %v860
        %v862 = vpop.xlane.xlu0 %861
        %v863 = vsub.f32 %v836, %v853
        %v864 = vsub.f32 %v839, %v856
        %v865 = vsub.f32 %v844, %v859
        %v866 = vsub.f32 %v847, %v862
        %v867 = vmul.f32 %v863, 1.442695
        %v868 = vpow.pop %v867
        %v869 = vmul.f32 %v864, 1.442695
        %v870 = vpow.pop %v869
        %v871 = vmul.f32 %v865, 1.442695
        %v872 = vpow.pop %v871
        %v873 = vmul.f32 %v866, 1.442695
        %v874 = vpow.pop %v873
        %v875 = vsel %vm850, %v868, 0.0
        %876 = vadd.xlane.f32.xlu0 %v875
        %v877 = vpop.xlane.xlu0 %876
        %v878 = vsel %vm850, %v870, 0.0
        %879 = vadd.xlane.f32.xlu0 %v878
        %v880 = vpop.xlane.xlu0 %879
        %v881 = vsel %vm850, %v872, 0.0
        %882 = vadd.xlane.f32.xlu0 %v881
        %v883 = vpop.xlane.xlu0 %882
        %v884 = vsel %vm850, %v874, 0.0
        %885 = vadd.xlane.f32.xlu0 %v884
        %v886 = vpop.xlane.xlu0 %885
        %v887 = vpack.c.bf16 %v870, %v868
        %v888 = vpack.c.bf16 %v874, %v872
        %v889 = vld [vmem:[%s335] sm:$0xf]
        %v891 = vsel %vm850, %v887, 0
        %v894 = vsel %vm850, %v888, 0
        %vm896 = vcmask 1043456
        %v898 = vsel %vm896, %v889, 0
        %900 = vmatprep.subr.bf16.mxu0 0
        %901 = vmatpush1.bf16.msra.mxu0 0
        %902 = vmatprep.subr.bf16.mxu0 0
        %903 = vmatpush1.bf16.msra.mxu0 0
        %904 = vmatprep.subr.bf16.mxu0 0
        %905 = vmatpush1.bf16.msra.mxu0 0
        %906 = vmatprep.subr.bf16.mxu0 0
        %907 = vmatpush1.bf16.msra.mxu0 0
        %908 = vmatprep.subr.bf16.mxu0 0
        %909 = vmatpush1.bf16.msra.mxu0 0
        %910 = vmatprep.subr.bf16.mxu0 0
        %911 = vmatpush1.bf16.msra.mxu0 0
        %912 = vmatprep.subr.bf16.mxu0 0
        %913 = vmatpush1.bf16.msra.mxu0 0
        %914 = vmatprep.subr.bf16.mxu0 0
        %915 = vmatpush1.bf16.msra.mxu0 %v898
        %916 = vmatprep.subr.bf16.mxu0 0
        %917 = vmatpush2.bf16.msra.mxu0 0
        %918 = vmatprep.subr.bf16.mxu0 0
        %919 = vmatpush2.bf16.msra.mxu0 0
        %920 = vmatprep.subr.bf16.mxu0 0
        %921 = vmatpush2.bf16.msra.mxu0 0
        %922 = vmatprep.subr.bf16.mxu0 0
        %923 = vmatpush2.bf16.msra.mxu0 0
        %924 = vmatprep.subr.bf16.mxu0 0
        %925 = vmatpush2.bf16.msra.mxu0 0
        %926 = vmatprep.subr.bf16.mxu0 0
        %927 = vmatpush2.bf16.msra.mxu0 0
        %928 = vmatprep.subr.bf16.mxu0 0
        %929 = vmatpush2.bf16.msra.mxu0 0
        %930 = vmatprep.subr.bf16.mxu0 0
        %931 = vmatpush2.bf16.msra.mxu0 0
        %932 = vmatprep.mubr.bf16.mxu0 0
        %933 = vmatmul.mubr.bf16.gmra.mxu0 %v891
        %v934 = vpop.f32.mrf.mxu0
        %v935 = vadd.f32 0.0, %v934
        %v936 = vpop.f32.mrf.mxu0
        %v937 = vpop.f32.mrf.mxu0
        %v938 = vadd.f32 0.0, %v937
        %v939 = vpop.f32.mrf.mxu0
        %940 = vmatprep.mubr.bf16.mxu0 0
        %941 = vmatmul.mubr.bf16.gmra.mxu0 %v894
        %v942 = vpop.f32.mrf.mxu0
        %v943 = vadd.f32 0.0, %v942
        %v944 = vpop.f32.mrf.mxu0
        %v945 = vpop.f32.mrf.mxu0
        %v946 = vadd.f32 0.0, %v945
        %v947 = vpop.f32.mrf.mxu0
        %948 = vdwg.mxu0
        %v949 = vrcp.pop %v877
        %v950 = vrcp.pop %v880
        %v951 = vrcp.pop %v883
        %v952 = vrcp.pop %v886
        %v953 = vmul.f32 %v935, %v949
        %v954 = vmul.f32 %v938, %v950
        %v955 = vmul.f32 %v943, %v951
        %v956 = vmul.f32 %v946, %v952
        %v957 = vpack.c.bf16 %v954, %v953
        %v958 = vpack.c.bf16 %v956, %v955
        %v959 = vld [vmem:[%s6] sm:$0xf]
        %v960 = vld [vmem:[%s6 + $0x4] sm:$0xf]
        %v961 = vld [vmem:[%s6 + $0x8] sm:$0xf]
        %v962 = vld [vmem:[%s6 + $0xc] sm:$0xf]
        %v964 = vrot.slane %v957, 4
        %v967 = vunpack.c.l.b16 %v961
        %v968 = vunpack.c.l.b16 %v962
        %v969 = vpack.c.b16 %v968, %v967
        %v972 = vsel %vm794, %v964, 0
        %974 = vmatprep.subr.bf16.mxu0 0
        %975 = vmatpush1.bf16.msra.mxu0 0
        %976 = vmatprep.subr.bf16.mxu0 0
        %977 = vmatpush1.bf16.msra.mxu0 0
        %978 = vmatprep.subr.bf16.mxu0 0
        %979 = vmatpush1.bf16.msra.mxu0 0
        %980 = vmatprep.subr.bf16.mxu0 0
        %981 = vmatpush1.bf16.msra.mxu0 0
        %982 = vmatprep.subr.bf16.mxu0 0
        %983 = vmatpush1.bf16.msra.mxu0 0
        %984 = vmatprep.subr.bf16.mxu0 0
        %985 = vmatpush1.bf16.msra.mxu0 0
        %986 = vmatprep.subr.bf16.mxu0 0
        %987 = vmatpush1.bf16.msra.mxu0 0
        %988 = vmatprep.subr.bf16.mxu0 0
        %989 = vmatpush1.bf16.msra.mxu0 %v969
        %990 = vmatprep.subr.bf16.mxu0 0
        %991 = vmatpush2.bf16.msra.mxu0 0
        %992 = vmatprep.subr.bf16.mxu0 0
        %993 = vmatpush2.bf16.msra.mxu0 0
        %994 = vmatprep.subr.bf16.mxu0 0
        %995 = vmatpush2.bf16.msra.mxu0 0
        %996 = vmatprep.subr.bf16.mxu0 0
        %997 = vmatpush2.bf16.msra.mxu0 0
        %998 = vmatprep.subr.bf16.mxu0 0
        %999 = vmatpush2.bf16.msra.mxu0 0
        %1000 = vmatprep.subr.bf16.mxu0 0
        %1001 = vmatpush2.bf16.msra.mxu0 0
        %1002 = vmatprep.subr.bf16.mxu0 0
        %1003 = vmatpush2.bf16.msra.mxu0 0
        %1004 = vmatprep.subr.bf16.mxu0 0
        %1005 = vmatpush2.bf16.msra.mxu0 0
        %1006 = vmatprep.mubr.bf16.mxu0 0
        %1007 = vmatmul.mubr.bf16.gmra.mxu0 %v972
        %v1008 = vpop.f32.mrf.mxu0
        %v1009 = vadd.f32 0.0, %v1008
        %v1010 = vpop.f32.mrf.mxu0
        %v1011 = vpop.f32.mrf.mxu0
        %v1012 = vpop.f32.mrf.mxu0
        %1013 = vdwg.mxu0
        %v1016 = vunpack.c.l.b16 %v959
        %v1017 = vunpack.c.l.b16 %v960
        %v1018 = vpack.c.b16 %v1017, %v1016
        %v1021 = vsel %vm794, %v957, 0
        %1023 = vmatprep.subr.bf16.mxu0 0
        %1024 = vmatpush1.bf16.msra.mxu0 0
        %1025 = vmatprep.subr.bf16.mxu0 0
        %1026 = vmatpush1.bf16.msra.mxu0 0
        %1027 = vmatprep.subr.bf16.mxu0 0
        %1028 = vmatpush1.bf16.msra.mxu0 0
        %1029 = vmatprep.subr.bf16.mxu0 0
        %1030 = vmatpush1.bf16.msra.mxu0 0
        %1031 = vmatprep.subr.bf16.mxu0 0
        %1032 = vmatpush1.bf16.msra.mxu0 0
        %1033 = vmatprep.subr.bf16.mxu0 0
        %1034 = vmatpush1.bf16.msra.mxu0 0
        %1035 = vmatprep.subr.bf16.mxu0 0
        %1036 = vmatpush1.bf16.msra.mxu0 0
        %1037 = vmatprep.subr.bf16.mxu0 0
        %1038 = vmatpush1.bf16.msra.mxu0 %v1018
        %1039 = vmatprep.subr.bf16.mxu0 0
        %1040 = vmatpush2.bf16.msra.mxu0 0
        %1041 = vmatprep.subr.bf16.mxu0 0
        %1042 = vmatpush2.bf16.msra.mxu0 0
        %1043 = vmatprep.subr.bf16.mxu0 0
        %1044 = vmatpush2.bf16.msra.mxu0 0
        %1045 = vmatprep.subr.bf16.mxu0 0
        %1046 = vmatpush2.bf16.msra.mxu0 0
        %1047 = vmatprep.subr.bf16.mxu0 0
        %1048 = vmatpush2.bf16.msra.mxu0 0
        %1049 = vmatprep.subr.bf16.mxu0 0
        %1050 = vmatpush2.bf16.msra.mxu0 0
        %1051 = vmatprep.subr.bf16.mxu0 0
        %1052 = vmatpush2.bf16.msra.mxu0 0
        %1053 = vmatprep.subr.bf16.mxu0 0
        %1054 = vmatpush2.bf16.msra.mxu0 0
        %1055 = vmatprep.mubr.bf16.mxu0 0
        %1056 = vmatmul.mubr.bf16.gmra.mxu0 %v1021
        %v1057 = vpop.f32.mrf.mxu0
        %v1058 = vadd.f32 %v1009, %v1057
        %v1059 = vpop.f32.mrf.mxu0
        %v1060 = vpop.f32.mrf.mxu0
        %v1061 = vpop.f32.mrf.mxu0
        %1062 = vdwg.mxu0
        %v1063 = vld [vmem:[%s6 + $0x10] sm:$0xf]
        %v1064 = vld [vmem:[%s6 + $0x14] sm:$0xf]
        %v1067 = vunpack.c.l.b16 %v1063
        %v1068 = vunpack.c.l.b16 %v1064
        %v1069 = vpack.c.b16 %v1068, %v1067
        %v1072 = vsel %vm794, %v958, 0
        %1074 = vmatprep.subr.bf16.mxu0 0
        %1075 = vmatpush1.bf16.msra.mxu0 0
        %1076 = vmatprep.subr.bf16.mxu0 0
        %1077 = vmatpush1.bf16.msra.mxu0 0
        %1078 = vmatprep.subr.bf16.mxu0 0
        %1079 = vmatpush1.bf16.msra.mxu0 0
        %1080 = vmatprep.subr.bf16.mxu0 0
        %1081 = vmatpush1.bf16.msra.mxu0 0
        %1082 = vmatprep.subr.bf16.mxu0 0
        %1083 = vmatpush1.bf16.msra.mxu0 0
        %1084 = vmatprep.subr.bf16.mxu0 0
        %1085 = vmatpush1.bf16.msra.mxu0 0
        %1086 = vmatprep.subr.bf16.mxu0 0
        %1087 = vmatpush1.bf16.msra.mxu0 0
        %1088 = vmatprep.subr.bf16.mxu0 0
        %1089 = vmatpush1.bf16.msra.mxu0 %v1069
        %1090 = vmatprep.subr.bf16.mxu0 0
        %1091 = vmatpush2.bf16.msra.mxu0 0
        %1092 = vmatprep.subr.bf16.mxu0 0
        %1093 = vmatpush2.bf16.msra.mxu0 0
        %1094 = vmatprep.subr.bf16.mxu0 0
        %1095 = vmatpush2.bf16.msra.mxu0 0
        %1096 = vmatprep.subr.bf16.mxu0 0
        %1097 = vmatpush2.bf16.msra.mxu0 0
        %1098 = vmatprep.subr.bf16.mxu0 0
        %1099 = vmatpush2.bf16.msra.mxu0 0
        %1100 = vmatprep.subr.bf16.mxu0 0
        %1101 = vmatpush2.bf16.msra.mxu0 0
        %1102 = vmatprep.subr.bf16.mxu0 0
        %1103 = vmatpush2.bf16.msra.mxu0 0
        %1104 = vmatprep.subr.bf16.mxu0 0
        %1105 = vmatpush2.bf16.msra.mxu0 0
        %1106 = vmatprep.mubr.bf16.mxu0 0
        %1107 = vmatmul.mubr.bf16.gmra.mxu0 %v1072
        %v1108 = vpop.f32.mrf.mxu0
        %v1109 = vadd.f32 0.0, %v1108
        %v1110 = vpop.f32.mrf.mxu0
        %v1111 = vpop.f32.mrf.mxu0
        %v1112 = vpop.f32.mrf.mxu0
        %1113 = vdwg.mxu0
        %v1114 = vadd.f32 %v1058, %v1109
        %v1115 = vld [vmem:[%s6 + $0x18] sm:$0xf]
        %v1116 = vld [vmem:[%s6 + $0x1c] sm:$0xf]
        %v1118 = vrot.slane %v958, 4
        %v1121 = vunpack.c.l.b16 %v1115
        %v1122 = vunpack.c.l.b16 %v1116
        %v1123 = vpack.c.b16 %v1122, %v1121
        %v1126 = vsel %vm794, %v1118, 0
        %1128 = vmatprep.subr.bf16.mxu0 0
        %1129 = vmatpush1.bf16.msra.mxu0 0
        %1130 = vmatprep.subr.bf16.mxu0 0
        %1131 = vmatpush1.bf16.msra.mxu0 0
        %1132 = vmatprep.subr.bf16.mxu0 0
        %1133 = vmatpush1.bf16.msra.mxu0 0
        %1134 = vmatprep.subr.bf16.mxu0 0
        %1135 = vmatpush1.bf16.msra.mxu0 0
        %1136 = vmatprep.subr.bf16.mxu0 0
        %1137 = vmatpush1.bf16.msra.mxu0 0
        %1138 = vmatprep.subr.bf16.mxu0 0
        %1139 = vmatpush1.bf16.msra.mxu0 0
        %1140 = vmatprep.subr.bf16.mxu0 0
        %1141 = vmatpush1.bf16.msra.mxu0 0
        %1142 = vmatprep.subr.bf16.mxu0 0
        %1143 = vmatpush1.bf16.msra.mxu0 %v1123
        %1144 = vmatprep.subr.bf16.mxu0 0
        %1145 = vmatpush2.bf16.msra.mxu0 0
        %1146 = vmatprep.subr.bf16.mxu0 0
        %1147 = vmatpush2.bf16.msra.mxu0 0
        %1148 = vmatprep.subr.bf16.mxu0 0
        %1149 = vmatpush2.bf16.msra.mxu0 0
        %1150 = vmatprep.subr.bf16.mxu0 0
        %1151 = vmatpush2.bf16.msra.mxu0 0
        %1152 = vmatprep.subr.bf16.mxu0 0
        %1153 = vmatpush2.bf16.msra.mxu0 0
        %1154 = vmatprep.subr.bf16.mxu0 0
        %1155 = vmatpush2.bf16.msra.mxu0 0
        %1156 = vmatprep.subr.bf16.mxu0 0
        %1157 = vmatpush2.bf16.msra.mxu0 0
        %1158 = vmatprep.subr.bf16.mxu0 0
        %1159 = vmatpush2.bf16.msra.mxu0 0
        %1160 = vmatprep.mubr.bf16.mxu0 0
        %1161 = vmatmul.mubr.bf16.gmra.mxu0 %v1126
        %v1162 = vpop.f32.mrf.mxu0
        %v1163 = vadd.f32 0.0, %v1162
        %v1164 = vpop.f32.mrf.mxu0
        %v1165 = vpop.f32.mrf.mxu0
        %v1166 = vpop.f32.mrf.mxu0
        %1167 = vdwg.mxu0
        %v1168 = vadd.f32 %v1114, %v1163
        %1169 = vst [vmem:[%s319] sm:$0xff] %v1168
        %s1170 = sand.u32 %s207, 1
        %s1171 = scalar_lea.sflag [#allocation3], %s1170
        %s1172 = sand.u32 %s207, 1
        %s1173 = smul.addr %s1172, 8
        %s1174 = scalar_lea.vmem [#allocation2], %s1173
        // Predicated region
        $region49: #{tpu_custom_call.1} parent=47 // pred_check
          %p1175 = pneg %p217
        $region50: #{tpu_custom_call.1} parent=47 // pred_check_branch
          %1177 = sbr.rel (%p1175) target = $region52
        $region51: #{tpu_custom_call.1} parent=47 // pred_region
          %s1179 = ssub.s32 128, 128
          %1180 = vsyncadd %s1171, %s1179
          %s1181 = sadd.s32 %s26, %s25
          %s1182 = smul.addr %s1181, 128
          %s1183 = scalar_lea.hbm %s7, %s1182
          %s1185 = sshll.u32 %s1174, 4
          %s1186 = int_to_ptr.vmem [resolvable:$true] %s1185
          %1188 = dma.vmem_to_hbm [thread:$0]  %s1186, 128, %s1183, %s1171
        $region52: #{tpu_custom_call.1} parent=47 // pred_fallthru
          _
      $region48: #{tpu_custom_call.1} parent=5 // pred_fallthru
        _
      %p1189 = scmp.le.s32.totalorder 2, %s16
      // Predicated region
      $region53: #{tpu_custom_call.1} parent=5 // pred_check
        %p1190 = pneg %p1189
      $region54: #{tpu_custom_call.1} parent=5 // pred_check_branch
        %1192 = sbr.rel (%p1190) target = $region56
      $region55: #{tpu_custom_call.1} parent=5 // pred_region
        %s1193 = ssub.s32 %s16, 2
        // Predicated region
        $region57: #{tpu_custom_call.1} parent=55 // pred_check
          %p1194 = pneg %p223
        $region58: #{tpu_custom_call.1} parent=55 // pred_check_branch
          %1196 = sbr.rel (%p1194) target = $region60
        $region59: #{tpu_custom_call.1} parent=55 // pred_region
          %s1197 = sand.u32 %s208, 1
          %s1198 = scalar_lea.sflag [#allocation3], %s1197
          %s1199 = sand.u32 %s208, 1
          %s1200 = smul.addr %s1199, 8
          %s1201 = scalar_lea.vmem [#allocation2], %s1200
          %1202 = dma.done %s1198, 128
        $region60: #{tpu_custom_call.1} parent=55 // pred_fallthru
          _
      $region56: #{tpu_custom_call.1} parent=5 // pred_fallthru
        _
    $region6: #{tpu_custom_call.1} parent=1 // loop_footer
      %s20 = sadd.s32 1, %s16
    $region7: #{tpu_custom_call.1} parent=1 // loop_footer_branch
      %15 = sbr.rel target = $region3
    $region8: #{tpu_custom_call.1} parent=1 // loop_exit
      _
    %1203 = vsyncpa [#allocation3], 1
    %s1204 = scalar_lea.sflag [#allocation3], 1
    %1205 = vsyncpa %s1204, 1

// kernel: tpu_custom_call.1
$region0: #{tpu_custom_call.1}
  #allocation0 [shape = 'u32[]', space=smem, size = 0x4, offset = 0x4, fixed_abs, tag = 'smem constant byte address 0x4 - core index']
  #allocation1 [shape = 'u32[144,128]{1,0:T(1,128)}', space=vmem, size = 0x12000, scoped, tag = 'internal scratch']
  %s0 = inlined_call_operand.vmem [shape: f32[2,8,128], index: 0, kind: input, shape index: {}]
  %s1 = inlined_call_operand.vmem [shape: bf16[2,16,8], index: 1, kind: input, shape index: {}]
  %s2 = inlined_call_operand.vmem [shape: bf16[2,8,16], index: 2, kind: input, shape index: {}]
  %s3 = inlined_call_operand.vmem [shape: f32[1,128], index: 3, kind: input, shape index: {}]
  %s4 = inlined_call_operand.vmem [shape: f32[1,128], index: 4, kind: input, shape index: {}]
  %s5 = inlined_call_operand.vmem [shape: bf16[512,16], index: 5, kind: input, shape index: {}]
  %s6 = inlined_call_operand.vmem [shape: bf16[64,128], index: 6, kind: input, shape index: {}]
  %s7 = inlined_call_operand.hbm [shape: f32[2,8,128], index: 7, kind: output, shape index: {}]
  %s8 = sld [smem:[#allocation0]]
  $region61: #{tpu_custom_call.1} parent=0
    _
  %s10 = ssub.s32 1, %s8
  %s11 = scalar_select 0, %s10, %s8
  $region1: #{tpu_custom_call.1} parent=0
    #allocation2 [shape = 'u8[8192]{0}', space=vmem, size = 0x2000, scoped, tag = 'output window, operand 0']
    #allocation3 [shape = 's32[2]{0}', space=sflag, size = 0x8, scoped, tag = 'scoped memory for tpu_custom_call.1']
    %12 = vsyncpa [#allocation3], 0
    %s13 = scalar_lea.sflag [#allocation3], 1
    %14 = vsyncpa %s13, 0
    loop: start=0, step=1, limit=4
    $region2: #{tpu_custom_call.1} parent=1 // loop_pre_header
      _
    $region3: #{tpu_custom_call.1} parent=1 // loop_header
      %s16 = sphi 0, %s20
      %p17 = scmp.ge.s32.totalorder %s16, 4
      %s23 = sphi 0, %s35
      %s24 = sphi 0, %s31
      %s25 = sphi 0, %s23
      %s26 = sphi 0, %s24
      %s27 = sphi 0, %s25
      %s28 = sphi 0, %s26
      %s40 = sphi 0, %s42
      %s43 = sphi 0, %s40
      %s44 = sphi 0, %s43
      %s60 = sphi 0, %s44
      %s66 = sphi 0, %s68
      %s69 = sphi 0, %s66
      %s70 = sphi 0, %s69
      %s86 = sphi 0, %s70
      %s92 = sphi 0, %s94
      %s95 = sphi 0, %s92
      %s96 = sphi 0, %s95
      %s112 = sphi 0, %s96
      %s116 = sphi 0, %s116
      %s118 = sphi 0, %s116
      %s119 = sphi 0, %s118
      %s133 = sphi 0, %s119
      %s137 = sphi 0, %s137
      %s139 = sphi 0, %s137
      %s140 = sphi 0, %s139
      %s154 = sphi 0, %s140
      %s158 = sphi 0, %s158
      %s160 = sphi 0, %s158
      %s161 = sphi 0, %s160
      %s175 = sphi 0, %s161
      %s179 = sphi 0, %s179
      %s181 = sphi 0, %s179
      %s182 = sphi 0, %s181
      %s196 = sphi 0, %s182
      %s204 = sphi 0, %s206
      %s207 = sphi 0, %s204
      %s208 = sphi 0, %s207
      %s224 = sphi 0, %s208
    $region4: #{tpu_custom_call.1} parent=1 // loop_header_branch
      %19 = sbr.rel (%p17) target = $region8
    $region5: #{tpu_custom_call.1} parent=1 // loop_body
      %s21 = ssub.s32 %s16, 1
      %s22 = ssub.s32 %s16, 2
      %s29 = sadd.s32 1, %s24
      %p30 = scmp.ge.s32.totalorder %s29, 1
      %s31 = scalar_select %p30, 0, %s29
      %s32 = sadd.s32 1, %s23
      %s33 = scalar_select %p30, %s32, %s23
      %p34 = scmp.ge.s32.totalorder %s33, 2
      %s35 = scalar_select %p34, 0, %s33
      %s36 = ssub.s32 %s23, %s35
      %s37 = ssub.s32 %s24, %s31
      %s38 = sor.u32 %s36, %s37
      %p39 = scmp.eq.s32.totalorder %s38, 0
      %s41 = sadd.s32 %s40, 1
      %s42 = scalar_select %p39, %s40, %s41
      %p45 = pneg %p39
      %p46 = scmp.eq.s32.totalorder %s16, 1
      %p47 = por %p45, %p46
      %p48 = scmp.ne.s32.totalorder %s40, %s43
      %p49 = scmp.eq.s32.totalorder %s16, 0
      %p50 = por %p48, %p49
      %p51 = scmp.ne.s32.totalorder %s40, %s43
      %p52 = scmp.eq.s32.totalorder %s21, 1
      %p53 = por %p51, %p52
      %p54 = scmp.ne.s32.totalorder %s43, %s44
      %p55 = scmp.eq.s32.totalorder %s21, 0
      %p56 = por %p54, %p55
      %p57 = scmp.ne.s32.totalorder %s43, %s44
      %p58 = scmp.eq.s32.totalorder %s22, 1
      %p59 = por %p57, %p58
      %p61 = scmp.ne.s32.totalorder %s44, %s60
      %p62 = scmp.eq.s32.totalorder %s22, 0
      %p63 = por %p61, %p62
      %s64 = ssub.s32 %s23, %s35
      %p65 = scmp.eq.s32.totalorder %s64, 0
      %s67 = sadd.s32 %s66, 1
      %s68 = scalar_select %p65, %s66, %s67
      %p71 = pneg %p65
      %p72 = scmp.eq.s32.totalorder %s16, 1
      %p73 = por %p71, %p72
      %p74 = scmp.ne.s32.totalorder %s66, %s69
      %p75 = scmp.eq.s32.totalorder %s16, 0
      %p76 = por %p74, %p75
      %p77 = scmp.ne.s32.totalorder %s66, %s69
      %p78 = scmp.eq.s32.totalorder %s21, 1
      %p79 = por %p77, %p78
      %p80 = scmp.ne.s32.totalorder %s69, %s70
      %p81 = scmp.eq.s32.totalorder %s21, 0
      %p82 = por %p80, %p81
      %p83 = scmp.ne.s32.totalorder %s69, %s70
      %p84 = scmp.eq.s32.totalorder %s22, 1
      %p85 = por %p83, %p84
      %p87 = scmp.ne.s32.totalorder %s70, %s86
      %p88 = scmp.eq.s32.totalorder %s22, 0
      %p89 = por %p87, %p88
      %s90 = ssub.s32 %s23, %s35
      %p91 = scmp.eq.s32.totalorder %s90, 0
      %s93 = sadd.s32 %s92, 1
      %s94 = scalar_select %p91, %s92, %s93
      %p97 = pneg %p91
      %p98 = scmp.eq.s32.totalorder %s16, 1
      %p99 = por %p97, %p98
      %p100 = scmp.ne.s32.totalorder %s92, %s95
      %p101 = scmp.eq.s32.totalorder %s16, 0
      %p102 = por %p100, %p101
      %p103 = scmp.ne.s32.totalorder %s92, %s95
      %p104 = scmp.eq.s32.totalorder %s21, 1
      %p105 = por %p103, %p104
      %p106 = scmp.ne.s32.totalorder %s95, %s96
      %p107 = scmp.eq.s32.totalorder %s21, 0
      %p108 = por %p106, %p107
      %p109 = scmp.ne.s32.totalorder %s95, %s96
      %p110 = scmp.eq.s32.totalorder %s22, 1
      %p111 = por %p109, %p110
      %p113 = scmp.ne.s32.totalorder %s96, %s112
      %p114 = scmp.eq.s32.totalorder %s22, 0
      %p115 = por %p113, %p114
      %s117 = sadd.s32 %s116, 1
      %p120 = scmp.eq.s32.totalorder %s16, 1
      %p121 = scmp.ne.s32.totalorder %s116, %s118
      %p122 = scmp.eq.s32.totalorder %s16, 0
      %p123 = por %p121, %p122
      %p124 = scmp.ne.s32.totalorder %s116, %s118
      %p125 = scmp.eq.s32.totalorder %s21, 1
      %p126 = por %p124, %p125
      %p127 = scmp.ne.s32.totalorder %s118, %s119
      %p128 = scmp.eq.s32.totalorder %s21, 0
      %p129 = por %p127, %p128
      %p130 = scmp.ne.s32.totalorder %s118, %s119
      %p131 = scmp.eq.s32.totalorder %s22, 1
      %p132 = por %p130, %p131
      %p134 = scmp.ne.s32.totalorder %s119, %s133
      %p135 = scmp.eq.s32.totalorder %s22, 0
      %p136 = por %p134, %p135
      %s138 = sadd.s32 %s137, 1
      %p141 = scmp.eq.s32.totalorder %s16, 1
      %p142 = scmp.ne.s32.totalorder %s137, %s139
      %p143 = scmp.eq.s32.totalorder %s16, 0
      %p144 = por %p142, %p143
      %p145 = scmp.ne.s32.totalorder %s137, %s139
      %p146 = scmp.eq.s32.totalorder %s21, 1
      %p147 = por %p145, %p146
      %p148 = scmp.ne.s32.totalorder %s139, %s140
      %p149 = scmp.eq.s32.totalorder %s21, 0
      %p150 = por %p148, %p149
      %p151 = scmp.ne.s32.totalorder %s139, %s140
      %p152 = scmp.eq.s32.totalorder %s22, 1
      %p153 = por %p151, %p152
      %p155 = scmp.ne.s32.totalorder %s140, %s154
      %p156 = scmp.eq.s32.totalorder %s22, 0
      %p157 = por %p155, %p156
      %s159 = sadd.s32 %s158, 1
      %p162 = scmp.eq.s32.totalorder %s16, 1
      %p163 = scmp.ne.s32.totalorder %s158, %s160
      %p164 = scmp.eq.s32.totalorder %s16, 0
      %p165 = por %p163, %p164
      %p166 = scmp.ne.s32.totalorder %s158, %s160
      %p167 = scmp.eq.s32.totalorder %s21, 1
      %p168 = por %p166, %p167
      %p169 = scmp.ne.s32.totalorder %s160, %s161
      %p170 = scmp.eq.s32.totalorder %s21, 0
      %p171 = por %p169, %p170
      %p172 = scmp.ne.s32.totalorder %s160, %s161
      %p173 = scmp.eq.s32.totalorder %s22, 1
      %p174 = por %p172, %p173
      %p176 = scmp.ne.s32.totalorder %s161, %s175
      %p177 = scmp.eq.s32.totalorder %s22, 0
      %p178 = por %p176, %p177
      %s180 = sadd.s32 %s179, 1
      %p183 = scmp.eq.s32.totalorder %s16, 1
      %p184 = scmp.ne.s32.totalorder %s179, %s181
      %p185 = scmp.eq.s32.totalorder %s16, 0
      %p186 = por %p184, %p185
      %p187 = scmp.ne.s32.totalorder %s179, %s181
      %p188 = scmp.eq.s32.totalorder %s21, 1
      %p189 = por %p187, %p188
      %p190 = scmp.ne.s32.totalorder %s181, %s182
      %p191 = scmp.eq.s32.totalorder %s21, 0
      %p192 = por %p190, %p191
      %p193 = scmp.ne.s32.totalorder %s181, %s182
      %p194 = scmp.eq.s32.totalorder %s22, 1
      %p195 = por %p193, %p194
      %p197 = scmp.ne.s32.totalorder %s182, %s196
      %p198 = scmp.eq.s32.totalorder %s22, 0
      %p199 = por %p197, %p198
      %s200 = ssub.s32 %s23, %s35
      %s201 = ssub.s32 %s24, %s31
      %s202 = sor.u32 %s200, %s201
      %p203 = scmp.eq.s32.totalorder %s202, 0
      %s205 = sadd.s32 %s204, 1
      %s206 = scalar_select %p203, %s204, %s205
      %p209 = pneg %p203
      %p210 = scmp.eq.s32.totalorder %s16, 1
      %p211 = por %p209, %p210
      %p212 = scmp.ne.s32.totalorder %s204, %s207
      %p213 = scmp.eq.s32.totalorder %s16, 0
      %p214 = por %p212, %p213
      %p215 = scmp.ne.s32.totalorder %s204, %s207
      %p216 = scmp.eq.s32.totalorder %s21, 1
      %p217 = por %p215, %p216
      %p218 = scmp.ne.s32.totalorder %s207, %s208
      %p219 = scmp.eq.s32.totalorder %s21, 0
      %p220 = por %p218, %p219
      %p221 = scmp.ne.s32.totalorder %s207, %s208
      %p222 = scmp.eq.s32.totalorder %s22, 1
      %p223 = por %p221, %p222
      %p225 = scmp.ne.s32.totalorder %s208, %s224
      %p226 = scmp.eq.s32.totalorder %s22, 0
      %p227 = por %p225, %p226
      %p228 = scmp.le.s32.totalorder 1, %s16
      %p229 = scmp.lt.s32.totalorder %s16, 3
      %p230 = pnand %p228, %p229
      %p231 = pneg %p230
      // Predicated region
      $region9: #{tpu_custom_call.1} parent=5 // pred_check
        _
      $region10: #{tpu_custom_call.1} parent=5 // pred_check_branch
        %233 = sbr.rel (%p230) target = $region12
      $region11: #{tpu_custom_call.1} parent=5 // pred_region
        %s234 = ssub.s32 %s16, 1
        // Predicated region
        $region13: #{tpu_custom_call.1} parent=11 // pred_check
          %p235 = pneg %p129
        $region14: #{tpu_custom_call.1} parent=11 // pred_check_branch
          %237 = sbr.rel (%p235) target = $region16
        $region15: #{tpu_custom_call.1} parent=11 // pred_region
          _
        $region16: #{tpu_custom_call.1} parent=11 // pred_fallthru
          _
        // Predicated region
        $region17: #{tpu_custom_call.1} parent=11 // pred_check
          %p238 = pneg %p150
        $region18: #{tpu_custom_call.1} parent=11 // pred_check_branch
          %240 = sbr.rel (%p238) target = $region20
        $region19: #{tpu_custom_call.1} parent=11 // pred_region
          _
        $region20: #{tpu_custom_call.1} parent=11 // pred_fallthru
          _
        // Predicated region
        $region21: #{tpu_custom_call.1} parent=11 // pred_check
          %p241 = pneg %p171
        $region22: #{tpu_custom_call.1} parent=11 // pred_check_branch
          %243 = sbr.rel (%p241) target = $region24
        $region23: #{tpu_custom_call.1} parent=11 // pred_region
          _
        $region24: #{tpu_custom_call.1} parent=11 // pred_fallthru
          _
        // Predicated region
        $region25: #{tpu_custom_call.1} parent=11 // pred_check
          %p244 = pneg %p192
        $region26: #{tpu_custom_call.1} parent=11 // pred_check_branch
          %246 = sbr.rel (%p244) target = $region28
        $region27: #{tpu_custom_call.1} parent=11 // pred_region
          _
        $region28: #{tpu_custom_call.1} parent=11 // pred_fallthru
          _
      $region12: #{tpu_custom_call.1} parent=5 // pred_fallthru
        _
      %p247 = scmp.lt.s32.totalorder %s16, 2
      // Predicated region
      $region29: #{tpu_custom_call.1} parent=5 // pred_check
        %p248 = pneg %p247
      $region30: #{tpu_custom_call.1} parent=5 // pred_check_branch
        %250 = sbr.rel (%p248) target = $region32
      $region31: #{tpu_custom_call.1} parent=5 // pred_region
        // Predicated region
        $region33: #{tpu_custom_call.1} parent=31 // pred_check
          %p251 = pneg %p50
        $region34: #{tpu_custom_call.1} parent=31 // pred_check_branch
          %253 = sbr.rel (%p251) target = $region36
        $region35: #{tpu_custom_call.1} parent=31 // pred_region
          %p254 = scmp.lt.s32.totalorder %s23, 1
          %s255 = scalar_select %p254, %s23, 1
          %p256 = scmp.lt.s32.totalorder %s24, 0
          %s257 = scalar_select %p256, %s24, 0
          %s258 = sadd.s32 %s257, %s255
          %s259 = smul.addr %s258, 8
          %s260 = scalar_lea.vmem %s0, %s259
        $region36: #{tpu_custom_call.1} parent=31 // pred_fallthru
          _
        // Predicated region
        $region37: #{tpu_custom_call.1} parent=31 // pred_check
          %p261 = pneg %p76
        $region38: #{tpu_custom_call.1} parent=31 // pred_check_branch
          %263 = sbr.rel (%p261) target = $region40
        $region39: #{tpu_custom_call.1} parent=31 // pred_region
          %p264 = scmp.lt.s32.totalorder %s23, 1
          %s265 = scalar_select %p264, %s23, 1
          %s266 = smul.addr %s265, 2
          %s267 = smul.addr %s266, 4
          %s268 = scalar_lea.vmem %s1, %s267
        $region40: #{tpu_custom_call.1} parent=31 // pred_fallthru
          _
        // Predicated region
        $region41: #{tpu_custom_call.1} parent=31 // pred_check
          %p269 = pneg %p102
        $region42: #{tpu_custom_call.1} parent=31 // pred_check_branch
          %271 = sbr.rel (%p269) target = $region44
        $region43: #{tpu_custom_call.1} parent=31 // pred_region
          %p272 = scmp.lt.s32.totalorder %s23, 1
          %s273 = scalar_select %p272, %s23, 1
          %s274 = smul.addr %s273, 4
          %s275 = scalar_lea.vmem %s2, %s274
        $region44: #{tpu_custom_call.1} parent=31 // pred_fallthru
          _
      $region32: #{tpu_custom_call.1} parent=5 // pred_fallthru
        _
      %p276 = scmp.le.s32.totalorder 1, %s16
      %p277 = scmp.lt.s32.totalorder %s16, 3
      %p278 = pnand %p276, %p277
      %p279 = pneg %p278
      // Predicated region
      $region45: #{tpu_custom_call.1} parent=5 // pred_check
        _
      $region46: #{tpu_custom_call.1} parent=5 // pred_check_branch
        %281 = sbr.rel (%p278) target = $region48
      $region47: #{tpu_custom_call.1} parent=5 // pred_region
        %s282 = ssub.s32 %s16, 1
        %p283 = scmp.lt.s32.totalorder %s25, 1
        %s284 = scalar_select %p283, %s25, 1
        %p285 = scmp.lt.s32.totalorder %s26, 0
        %s286 = scalar_select %p285, %s26, 0
        %s287 = sadd.s32 %s286, %s284
        %s288 = smul.addr %s287, 8
        %s289 = scalar_lea.vmem %s0, %s288
        %p290 = pneg %p56
        %p291 = pneg %p53
        %p292 = scmp.lt.s32.totalorder %s25, 1
        %s293 = scalar_select %p292, %s25, 1
        %s294 = smul.addr %s293, 2
        %s295 = smul.addr %s294, 4
        %s296 = scalar_lea.vmem %s1, %s295
        %p297 = pneg %p82
        %p298 = pneg %p79
        %p299 = scmp.lt.s32.totalorder %s25, 1
        %s300 = scalar_select %p299, %s25, 1
        %s301 = smul.addr %s300, 4
        %s302 = scalar_lea.vmem %s2, %s301
        %p303 = pneg %p108
        %p304 = pneg %p105
        %p305 = pneg %p129
        %p306 = pneg %p126
        %p307 = pneg %p150
        %p308 = pneg %p147
        %p309 = pneg %p171
        %p310 = pneg %p168
        %p311 = pneg %p192
        %p312 = pneg %p189
        %p313 = pneg %p220
        %p314 = pneg %p217
        %s315 = sand.u32 %s207, 1
        %s316 = scalar_lea.sflag [#allocation3], %s315
        %s317 = sand.u32 %s207, 1
        %s318 = smul.addr %s317, 8
        %s319 = scalar_lea.vmem [#allocation2], %s318
        %p320 = scmp.lt.s32.totalorder %s25, 1
        %s321 = scalar_select %p320, %s25, 1
        %p322 = scmp.lt.s32.totalorder %s26, 0
        %s323 = scalar_select %p322, %s26, 0
        %s324 = sadd.s32 %s323, %s321
        %s325 = smul.addr %s324, 8
        %s326 = scalar_lea.vmem %s0, %s325
        %p327 = scmp.lt.s32.totalorder %s25, 1
        %s328 = scalar_select %p327, %s25, 1
        %s329 = smul.addr %s328, 2
        %s330 = smul.addr %s329, 4
        %s331 = scalar_lea.vmem %s1, %s330
        %p332 = scmp.lt.s32.totalorder %s25, 1
        %s333 = scalar_select %p332, %s25, 1
        %s334 = smul.addr %s333, 4
        %s335 = scalar_lea.vmem %s2, %s334
        %v337 = vld [vmem:[%s326] sm:$0xff]
        %338 = vadd.xlane.f32.xlu0 %v337
        %v339 = vpop.xlane.xlu0 %338
        %v340 = vmul.f32 %v339, 0.03125
        %v341 = vmul.f32 %v337, %v337
        %342 = vadd.xlane.f32.xlu0 %v341
        %v343 = vpop.xlane.xlu0 %342
        %v344 = vmul.f32 %v343, 0.03125
        %v345 = vmul.f32 %v340, %v340
        %v346 = vsub.f32 %v344, %v345
        %v347 = vsub.f32 %v337, %v340
        %v348 = vadd.f32 %v346, 1e-05
        %v349 = vrsqrt.pop %v348
        %v350 = vmul.f32 %v347, %v349
        %v351 = vld [vmem:[%s3] sm:$0x1]
        %v353 = vlaneseq
        %v354 = vshrl.u32 %v353, 7
        %v355 = vsub.s32 0, %v354
        %v356 = vrot.slane %v351, %v355
        %v358 = vmul.f32 %v350, %v356
        %v359 = vld [vmem:[%s4] sm:$0x1]
        %v361 = vlaneseq
        %v362 = vshrl.u32 %v361, 7
        %v363 = vsub.s32 0, %v362
        %v364 = vrot.slane %v359, %v363
        %v366 = vadd.f32 %v358, %v364
        %v367 = vpack.c.bf16 %v366, %v366
        %v368 = vld [vmem:[%s5] sm:$0xf]
        %v369 = vld [vmem:[%s5 + $0x4] sm:$0xf]
        %v370 = vld [vmem:[%s5 + $0x8] sm:$0xf]
        %v371 = vld [vmem:[%s5 + $0xc] sm:$0xf]
        %v372 = vld [vmem:[%s5 + $0x10] sm:$0xf]
        %v373 = vld [vmem:[%s5 + $0x14] sm:$0xf]
        %v374 = vld [vmem:[%s5 + $0x18] sm:$0xf]
        %v375 = vld [vmem:[%s5 + $0x1c] sm:$0xf]
        %v376 = vld [vmem:[%s5 + $0x20] sm:$0xf]
        %v377 = vld [vmem:[%s5 + $0x24] sm:$0xf]
        %v378 = vld [vmem:[%s5 + $0x28] sm:$0xf]
        %v379 = vld [vmem:[%s5 + $0x2c] sm:$0xf]
        %v380 = vld [vmem:[%s5 + $0x30] sm:$0xf]
        %v381 = vld [vmem:[%s5 + $0x34] sm:$0xf]
        %v382 = vld [vmem:[%s5 + $0x38] sm:$0xf]
        %v383 = vld [vmem:[%s5 + $0x3c] sm:$0xf]
        %v400 = vunpack.c.l.b16 %v368
        %v401 = vunpack.c.l.b16 %v369
        %v402 = vunpack.c.l.b16 %v370
        %v403 = vunpack.c.l.b16 %v371
        %v404 = vunpack.c.l.b16 %v372
        %v405 = vunpack.c.l.b16 %v373
        %v406 = vunpack.c.l.b16 %v374
        %v407 = vunpack.c.l.b16 %v375
        %v408 = vunpack.c.l.b16 %v376
        %v409 = vunpack.c.l.b16 %v377
        %v410 = vunpack.c.l.b16 %v378
        %v411 = vunpack.c.l.b16 %v379
        %v412 = vunpack.c.l.b16 %v380
        %v413 = vunpack.c.l.b16 %v381
        %v414 = vunpack.c.l.b16 %v382
        %v415 = vunpack.c.l.b16 %v383
        %v416 = vpack.c.b16 %v401, %v400
        %v417 = vpack.c.b16 %v403, %v402
        %v418 = vpack.c.b16 %v405, %v404
        %v419 = vpack.c.b16 %v407, %v406
        %v420 = vpack.c.b16 %v409, %v408
        %v421 = vpack.c.b16 %v411, %v410
        %v422 = vpack.c.b16 %v413, %v412
        %v423 = vpack.c.b16 %v415, %v414
        %432 = vmatprep.subr.bf16.mxu0 0
        %433 = vmatpush1.bf16.msra.mxu0 %v423
        %434 = vmatprep.subr.bf16.mxu0 0
        %435 = vmatpush1.bf16.msra.mxu0 %v422
        %436 = vmatprep.subr.bf16.mxu0 0
        %437 = vmatpush1.bf16.msra.mxu0 %v421
        %438 = vmatprep.subr.bf16.mxu0 0
        %439 = vmatpush1.bf16.msra.mxu0 %v420
        %440 = vmatprep.subr.bf16.mxu0 0
        %441 = vmatpush1.bf16.msra.mxu0 %v419
        %442 = vmatprep.subr.bf16.mxu0 0
        %443 = vmatpush1.bf16.msra.mxu0 %v418
        %444 = vmatprep.subr.bf16.mxu0 0
        %445 = vmatpush1.bf16.msra.mxu0 %v417
        %446 = vmatprep.subr.bf16.mxu0 0
        %447 = vmatpush1.bf16.msra.mxu0 %v416
        %448 = vmatprep.subr.bf16.mxu0 0
        %449 = vmatpush2.bf16.msra.mxu0 0
        %450 = vmatprep.subr.bf16.mxu0 0
        %451 = vmatpush2.bf16.msra.mxu0 0
        %452 = vmatprep.subr.bf16.mxu0 0
        %453 = vmatpush2.bf16.msra.mxu0 0
        %454 = vmatprep.subr.bf16.mxu0 0
        %455 = vmatpush2.bf16.msra.mxu0 0
        %456 = vmatprep.subr.bf16.mxu0 0
        %457 = vmatpush2.bf16.msra.mxu0 0
        %458 = vmatprep.subr.bf16.mxu0 0
        %459 = vmatpush2.bf16.msra.mxu0 0
        %460 = vmatprep.subr.bf16.mxu0 0
        %461 = vmatpush2.bf16.msra.mxu0 0
        %462 = vmatprep.subr.bf16.mxu0 0
        %463 = vmatpush2.bf16.msra.mxu0 0
        %464 = vmatprep.mubr.bf16.mxu0 0
        %465 = vmatmul.mubr.bf16.gmra.mxu0 %v367
        %v466 = vpop.f32.mrf.mxu0
        %v467 = vadd.f32 0.0, %v466
        %v468 = vpop.f32.mrf.mxu0
        %v469 = vpop.f32.mrf.mxu0
        %v470 = vpop.f32.mrf.mxu0
        %471 = vdwg.mxu0
        %v472 = vld [vmem:[%s5 + $0x40] sm:$0xf]
        %v473 = vld [vmem:[%s5 + $0x44] sm:$0xf]
        %v474 = vld [vmem:[%s5 + $0x48] sm:$0xf]
        %v475 = vld [vmem:[%s5 + $0x4c] sm:$0xf]
        %v476 = vld [vmem:[%s5 + $0x50] sm:$0xf]
        %v477 = vld [vmem:[%s5 + $0x54] sm:$0xf]
        %v478 = vld [vmem:[%s5 + $0x58] sm:$0xf]
        %v479 = vld [vmem:[%s5 + $0x5c] sm:$0xf]
        %v480 = vld [vmem:[%s5 + $0x60] sm:$0xf]
        %v481 = vld [vmem:[%s5 + $0x64] sm:$0xf]
        %v482 = vld [vmem:[%s5 + $0x68] sm:$0xf]
        %v483 = vld [vmem:[%s5 + $0x6c] sm:$0xf]
        %v484 = vld [vmem:[%s5 + $0x70] sm:$0xf]
        %v485 = vld [vmem:[%s5 + $0x74] sm:$0xf]
        %v486 = vld [vmem:[%s5 + $0x78] sm:$0xf]
        %v487 = vld [vmem:[%s5 + $0x7c] sm:$0xf]
        %v504 = vunpack.c.l.b16 %v472
        %v505 = vunpack.c.l.b16 %v473
        %v506 = vunpack.c.l.b16 %v474
        %v507 = vunpack.c.l.b16 %v475
        %v508 = vunpack.c.l.b16 %v476
        %v509 = vunpack.c.l.b16 %v477
        %v510 = vunpack.c.l.b16 %v478
        %v511 = vunpack.c.l.b16 %v479
        %v512 = vunpack.c.l.b16 %v480
        %v513 = vunpack.c.l.b16 %v481
        %v514 = vunpack.c.l.b16 %v482
        %v515 = vunpack.c.l.b16 %v483
        %v516 = vunpack.c.l.b16 %v484
        %v517 = vunpack.c.l.b16 %v485
        %v518 = vunpack.c.l.b16 %v486
        %v519 = vunpack.c.l.b16 %v487
        %v520 = vpack.c.b16 %v505, %v504
        %v521 = vpack.c.b16 %v507, %v506
        %v522 = vpack.c.b16 %v509, %v508
        %v523 = vpack.c.b16 %v511, %v510
        %v524 = vpack.c.b16 %v513, %v512
        %v525 = vpack.c.b16 %v515, %v514
        %v526 = vpack.c.b16 %v517, %v516
        %v527 = vpack.c.b16 %v519, %v518
        %536 = vmatprep.subr.bf16.mxu0 0
        %537 = vmatpush1.bf16.msra.mxu0 %v527
        %538 = vmatprep.subr.bf16.mxu0 0
        %539 = vmatpush1.bf16.msra.mxu0 %v526
        %540 = vmatprep.subr.bf16.mxu0 0
        %541 = vmatpush1.bf16.msra.mxu0 %v525
        %542 = vmatprep.subr.bf16.mxu0 0
        %543 = vmatpush1.bf16.msra.mxu0 %v524
        %544 = vmatprep.subr.bf16.mxu0 0
        %545 = vmatpush1.bf16.msra.mxu0 %v523
        %546 = vmatprep.subr.bf16.mxu0 0
        %547 = vmatpush1.bf16.msra.mxu0 %v522
        %548 = vmatprep.subr.bf16.mxu0 0
        %549 = vmatpush1.bf16.msra.mxu0 %v521
        %550 = vmatprep.subr.bf16.mxu0 0
        %551 = vmatpush1.bf16.msra.mxu0 %v520
        %552 = vmatprep.subr.bf16.mxu0 0
        %553 = vmatpush2.bf16.msra.mxu0 0
        %554 = vmatprep.subr.bf16.mxu0 0
        %555 = vmatpush2.bf16.msra.mxu0 0
        %556 = vmatprep.subr.bf16.mxu0 0
        %557 = vmatpush2.bf16.msra.mxu0 0
        %558 = vmatprep.subr.bf16.mxu0 0
        %559 = vmatpush2.bf16.msra.mxu0 0
        %560 = vmatprep.subr.bf16.mxu0 0
        %561 = vmatpush2.bf16.msra.mxu0 0
        %562 = vmatprep.subr.bf16.mxu0 0
        %563 = vmatpush2.bf16.msra.mxu0 0
        %564 = vmatprep.subr.bf16.mxu0 0
        %565 = vmatpush2.bf16.msra.mxu0 0
        %566 = vmatprep.subr.bf16.mxu0 0
        %567 = vmatpush2.bf16.msra.mxu0 0
        %568 = vmatprep.mubr.bf16.mxu0 0
        %569 = vmatmul.mubr.bf16.gmra.mxu0 %v367
        %v570 = vpop.f32.mrf.mxu0
        %v571 = vadd.f32 0.0, %v570
        %v572 = vpop.f32.mrf.mxu0
        %v573 = vpop.f32.mrf.mxu0
        %v574 = vpop.f32.mrf.mxu0
        %575 = vdwg.mxu0
        %v576 = vld [vmem:[%s5 + $0x80] sm:$0xf]
        %v577 = vld [vmem:[%s5 + $0x84] sm:$0xf]
        %v578 = vld [vmem:[%s5 + $0x88] sm:$0xf]
        %v579 = vld [vmem:[%s5 + $0x8c] sm:$0xf]
        %v580 = vld [vmem:[%s5 + $0x90] sm:$0xf]
        %v581 = vld [vmem:[%s5 + $0x94] sm:$0xf]
        %v582 = vld [vmem:[%s5 + $0x98] sm:$0xf]
        %v583 = vld [vmem:[%s5 + $0x9c] sm:$0xf]
        %v584 = vld [vmem:[%s5 + $0xa0] sm:$0xf]
        %v585 = vld [vmem:[%s5 + $0xa4] sm:$0xf]
        %v586 = vld [vmem:[%s5 + $0xa8] sm:$0xf]
        %v587 = vld [vmem:[%s5 + $0xac] sm:$0xf]
        %v588 = vld [vmem:[%s5 + $0xb0] sm:$0xf]
        %v589 = vld [vmem:[%s5 + $0xb4] sm:$0xf]
        %v590 = vld [vmem:[%s5 + $0xb8] sm:$0xf]
        %v591 = vld [vmem:[%s5 + $0xbc] sm:$0xf]
        %v608 = vunpack.c.l.b16 %v576
        %v609 = vunpack.c.l.b16 %v577
        %v610 = vunpack.c.l.b16 %v578
        %v611 = vunpack.c.l.b16 %v579
        %v612 = vunpack.c.l.b16 %v580
        %v613 = vunpack.c.l.b16 %v581
        %v614 = vunpack.c.l.b16 %v582
        %v615 = vunpack.c.l.b16 %v583
        %v616 = vunpack.c.l.b16 %v584
        %v617 = vunpack.c.l.b16 %v585
        %v618 = vunpack.c.l.b16 %v586
        %v619 = vunpack.c.l.b16 %v587
        %v620 = vunpack.c.l.b16 %v588
        %v621 = vunpack.c.l.b16 %v589
        %v622 = vunpack.c.l.b16 %v590
        %v623 = vunpack.c.l.b16 %v591
        %v624 = vpack.c.b16 %v609, %v608
        %v625 = vpack.c.b16 %v611, %v610
        %v626 = vpack.c.b16 %v613, %v612
        %v627 = vpack.c.b16 %v615, %v614
        %v628 = vpack.c.b16 %v617, %v616
        %v629 = vpack.c.b16 %v619, %v618
        %v630 = vpack.c.b16 %v621, %v620
        %v631 = vpack.c.b16 %v623, %v622
        %640 = vmatprep.subr.bf16.mxu0 0
        %641 = vmatpush1.bf16.msra.mxu0 %v631
        %642 = vmatprep.subr.bf16.mxu0 0
        %643 = vmatpush1.bf16.msra.mxu0 %v630
        %644 = vmatprep.subr.bf16.mxu0 0
        %645 = vmatpush1.bf16.msra.mxu0 %v629
        %646 = vmatprep.subr.bf16.mxu0 0
        %647 = vmatpush1.bf16.msra.mxu0 %v628
        %648 = vmatprep.subr.bf16.mxu0 0
        %649 = vmatpush1.bf16.msra.mxu0 %v627
        %650 = vmatprep.subr.bf16.mxu0 0
        %651 = vmatpush1.bf16.msra.mxu0 %v626
        %652 = vmatprep.subr.bf16.mxu0 0
        %653 = vmatpush1.bf16.msra.mxu0 %v625
        %654 = vmatprep.subr.bf16.mxu0 0
        %655 = vmatpush1.bf16.msra.mxu0 %v624
        %656 = vmatprep.subr.bf16.mxu0 0
        %657 = vmatpush2.bf16.msra.mxu0 0
        %658 = vmatprep.subr.bf16.mxu0 0
        %659 = vmatpush2.bf16.msra.mxu0 0
        %660 = vmatprep.subr.bf16.mxu0 0
        %661 = vmatpush2.bf16.msra.mxu0 0
        %662 = vmatprep.subr.bf16.mxu0 0
        %663 = vmatpush2.bf16.msra.mxu0 0
        %664 = vmatprep.subr.bf16.mxu0 0
        %665 = vmatpush2.bf16.msra.mxu0 0
        %666 = vmatprep.subr.bf16.mxu0 0
        %667 = vmatpush2.bf16.msra.mxu0 0
        %668 = vmatprep.subr.bf16.mxu0 0
        %669 = vmatpush2.bf16.msra.mxu0 0
        %670 = vmatprep.subr.bf16.mxu0 0
        %671 = vmatpush2.bf16.msra.mxu0 0
        %672 = vmatprep.mubr.bf16.mxu0 0
        %673 = vmatmul.mubr.bf16.gmra.mxu0 %v367
        %v674 = vpop.f32.mrf.mxu0
        %v675 = vadd.f32 0.0, %v674
        %v676 = vpop.f32.mrf.mxu0
        %v677 = vpop.f32.mrf.mxu0
        %v678 = vpop.f32.mrf.mxu0
        %679 = vdwg.mxu0
        %v680 = vld [vmem:[%s5 + $0xc0] sm:$0xf]
        %v681 = vld [vmem:[%s5 + $0xc4] sm:$0xf]
        %v682 = vld [vmem:[%s5 + $0xc8] sm:$0xf]
        %v683 = vld [vmem:[%s5 + $0xcc] sm:$0xf]
        %v684 = vld [vmem:[%s5 + $0xd0] sm:$0xf]
        %v685 = vld [vmem:[%s5 + $0xd4] sm:$0xf]
        %v686 = vld [vmem:[%s5 + $0xd8] sm:$0xf]
        %v687 = vld [vmem:[%s5 + $0xdc] sm:$0xf]
        %v688 = vld [vmem:[%s5 + $0xe0] sm:$0xf]
        %v689 = vld [vmem:[%s5 + $0xe4] sm:$0xf]
        %v690 = vld [vmem:[%s5 + $0xe8] sm:$0xf]
        %v691 = vld [vmem:[%s5 + $0xec] sm:$0xf]
        %v692 = vld [vmem:[%s5 + $0xf0] sm:$0xf]
        %v693 = vld [vmem:[%s5 + $0xf4] sm:$0xf]
        %v694 = vld [vmem:[%s5 + $0xf8] sm:$0xf]
        %v695 = vld [vmem:[%s5 + $0xfc] sm:$0xf]
        %v712 = vunpack.c.l.b16 %v680
        %v713 = vunpack.c.l.b16 %v681
        %v714 = vunpack.c.l.b16 %v682
        %v715 = vunpack.c.l.b16 %v683
        %v716 = vunpack.c.l.b16 %v684
        %v717 = vunpack.c.l.b16 %v685
        %v718 = vunpack.c.l.b16 %v686
        %v719 = vunpack.c.l.b16 %v687
        %v720 = vunpack.c.l.b16 %v688
        %v721 = vunpack.c.l.b16 %v689
        %v722 = vunpack.c.l.b16 %v690
        %v723 = vunpack.c.l.b16 %v691
        %v724 = vunpack.c.l.b16 %v692
        %v725 = vunpack.c.l.b16 %v693
        %v726 = vunpack.c.l.b16 %v694
        %v727 = vunpack.c.l.b16 %v695
        %v728 = vpack.c.b16 %v713, %v712
        %v729 = vpack.c.b16 %v715, %v714
        %v730 = vpack.c.b16 %v717, %v716
        %v731 = vpack.c.b16 %v719, %v718
        %v732 = vpack.c.b16 %v721, %v720
        %v733 = vpack.c.b16 %v723, %v722
        %v734 = vpack.c.b16 %v725, %v724
        %v735 = vpack.c.b16 %v727, %v726
        %744 = vmatprep.subr.bf16.mxu0 0
        %745 = vmatpush1.bf16.msra.mxu0 %v735
        %746 = vmatprep.subr.bf16.mxu0 0
        %747 = vmatpush1.bf16.msra.mxu0 %v734
        %748 = vmatprep.subr.bf16.mxu0 0
        %749 = vmatpush1.bf16.msra.mxu0 %v733
        %750 = vmatprep.subr.bf16.mxu0 0
        %751 = vmatpush1.bf16.msra.mxu0 %v732
        %752 = vmatprep.subr.bf16.mxu0 0
        %753 = vmatpush1.bf16.msra.mxu0 %v731
        %754 = vmatprep.subr.bf16.mxu0 0
        %755 = vmatpush1.bf16.msra.mxu0 %v730
        %756 = vmatprep.subr.bf16.mxu0 0
        %757 = vmatpush1.bf16.msra.mxu0 %v729
        %758 = vmatprep.subr.bf16.mxu0 0
        %759 = vmatpush1.bf16.msra.mxu0 %v728
        %760 = vmatprep.subr.bf16.mxu0 0
        %761 = vmatpush2.bf16.msra.mxu0 0
        %762 = vmatprep.subr.bf16.mxu0 0
        %763 = vmatpush2.bf16.msra.mxu0 0
        %764 = vmatprep.subr.bf16.mxu0 0
        %765 = vmatpush2.bf16.msra.mxu0 0
        %766 = vmatprep.subr.bf16.mxu0 0
        %767 = vmatpush2.bf16.msra.mxu0 0
        %768 = vmatprep.subr.bf16.mxu0 0
        %769 = vmatpush2.bf16.msra.mxu0 0
        %770 = vmatprep.subr.bf16.mxu0 0
        %771 = vmatpush2.bf16.msra.mxu0 0
        %772 = vmatprep.subr.bf16.mxu0 0
        %773 = vmatpush2.bf16.msra.mxu0 0
        %774 = vmatprep.subr.bf16.mxu0 0
        %775 = vmatpush2.bf16.msra.mxu0 0
        %776 = vmatprep.mubr.bf16.mxu0 0
        %777 = vmatmul.mubr.bf16.gmra.mxu0 %v367
        %v778 = vpop.f32.mrf.mxu0
        %v779 = vadd.f32 0.0, %v778
        %v780 = vpop.f32.mrf.mxu0
        %v781 = vpop.f32.mrf.mxu0
        %v782 = vpop.f32.mrf.mxu0
        %783 = vdwg.mxu0
        %v784 = vpack.c.bf16 %v571, %v467
        %v785 = vpack.c.bf16 %v779, %v675
        %v786 = vld [vmem:[%s331] sm:$0xf]
        %v787 = vld [vmem:[%s331 + $0x4] sm:$0xf]
        %v790 = vunpack.c.l.b16 %v786
        %v791 = vunpack.c.l.b16 %v787
        %v792 = vpack.c.b16 %v791, %v790
        %vm794 = vcmask 130048
        %v796 = vsel %vm794, %v784, 0
        %v799 = vsel %vm794, %v785, 0
        %801 = vmatprep.subr.bf16.mxu0 0
        %802 = vmatpush1.bf16.msra.mxu0 0
        %803 = vmatprep.subr.bf16.mxu0 0
        %804 = vmatpush1.bf16.msra.mxu0 0
        %805 = vmatprep.subr.bf16.mxu0 0
        %806 = vmatpush1.bf16.msra.mxu0 0
        %807 = vmatprep.subr.bf16.mxu0 0
        %808 = vmatpush1.bf16.msra.mxu0 0
        %809 = vmatprep.subr.bf16.mxu0 0
        %810 = vmatpush1.bf16.msra.mxu0 0
        %811 = vmatprep.subr.bf16.mxu0 0
        %812 = vmatpush1.bf16.msra.mxu0 0
        %813 = vmatprep.subr.bf16.mxu0 0
        %814 = vmatpush1.bf16.msra.mxu0 0
        %815 = vmatprep.subr.bf16.mxu0 0
        %816 = vmatpush1.bf16.msra.mxu0 %v792
        %817 = vmatprep.subr.bf16.mxu0 0
        %818 = vmatpush2.bf16.msra.mxu0 0
        %819 = vmatprep.subr.bf16.mxu0 0
        %820 = vmatpush2.bf16.msra.mxu0 0
        %821 = vmatprep.subr.bf16.mxu0 0
        %822 = vmatpush2.bf16.msra.mxu0 0
        %823 = vmatprep.subr.bf16.mxu0 0
        %824 = vmatpush2.bf16.msra.mxu0 0
        %825 = vmatprep.subr.bf16.mxu0 0
        %826 = vmatpush2.bf16.msra.mxu0 0
        %827 = vmatprep.subr.bf16.mxu0 0
        %828 = vmatpush2.bf16.msra.mxu0 0
        %829 = vmatprep.subr.bf16.mxu0 0
        %830 = vmatpush2.bf16.msra.mxu0 0
        %831 = vmatprep.subr.bf16.mxu0 0
        %832 = vmatpush2.bf16.msra.mxu0 0
        %833 = vmatprep.mubr.bf16.mxu0 0
        %834 = vmatmul.mubr.bf16.gmra.mxu0 %v796
        %v835 = vpop.f32.mrf.mxu0
        %v836 = vadd.f32 0.0, %v835
        %v837 = vpop.f32.mrf.mxu0
        %v838 = vpop.f32.mrf.mxu0
        %v839 = vadd.f32 0.0, %v838
        %v840 = vpop.f32.mrf.mxu0
        %841 = vmatprep.mubr.bf16.mxu0 0
        %842 = vmatmul.mubr.bf16.gmra.mxu0 %v799
        %v843 = vpop.f32.mrf.mxu0
        %v844 = vadd.f32 0.0, %v843
        %v845 = vpop.f32.mrf.mxu0
        %v846 = vpop.f32.mrf.mxu0
        %v847 = vadd.f32 0.0, %v846
        %v848 = vpop.f32.mrf.mxu0
        %849 = vdwg.mxu0
        %vm850 = vcmask 64512
        %v851 = vsel %vm850, %v836, -inf
        %852 = vmax.xlane.f32.xlu0 %v851
        %v853 = vpop.xlane.xlu0 %852
        %v854 = vsel %vm850, %v839, -inf
        %855 = vmax.xlane.f32.xlu0 %v854
        %v856 = vpop.xlane.xlu0 %855
        %v857 = vsel %vm850, %v844, -inf
        %858 = vmax.xlane.f32.xlu0 %v857
        %v859 = vpop.xlane.xlu0 %858
        %v860 = vsel %vm850, %v847, -inf
        %861 = vmax.xlane.f32.xlu0 %v860
        %v862 = vpop.xlane.xlu0 %861
        %v863 = vsub.f32 %v836, %v853
        %v864 = vsub.f32 %v839, %v856
        %v865 = vsub.f32 %v844, %v859
        %v866 = vsub.f32 %v847, %v862
        %v867 = vmul.f32 %v863, 1.442695
        %v868 = vpow.pop %v867
        %v869 = vmul.f32 %v864, 1.442695
        %v870 = vpow.pop %v869
        %v871 = vmul.f32 %v865, 1.442695
        %v872 = vpow.pop %v871
        %v873 = vmul.f32 %v866, 1.442695
        %v874 = vpow.pop %v873
        %v875 = vsel %vm850, %v868, 0.0
        %876 = vadd.xlane.f32.xlu0 %v875
        %v877 = vpop.xlane.xlu0 %876
        %v878 = vsel %vm850, %v870, 0.0
        %879 = vadd.xlane.f32.xlu0 %v878
        %v880 = vpop.xlane.xlu0 %879
        %v881 = vsel %vm850, %v872, 0.0
        %882 = vadd.xlane.f32.xlu0 %v881
        %v883 = vpop.xlane.xlu0 %882
        %v884 = vsel %vm850, %v874, 0.0
        %885 = vadd.xlane.f32.xlu0 %v884
        %v886 = vpop.xlane.xlu0 %885
        %v887 = vpack.c.bf16 %v870, %v868
        %v888 = vpack.c.bf16 %v874, %v872
        %v889 = vld [vmem:[%s335] sm:$0xf]
        %v891 = vsel %vm850, %v887, 0
        %v894 = vsel %vm850, %v888, 0
        %vm896 = vcmask 1043456
        %v898 = vsel %vm896, %v889, 0
        %900 = vmatprep.subr.bf16.mxu0 0
        %901 = vmatpush1.bf16.msra.mxu0 0
        %902 = vmatprep.subr.bf16.mxu0 0
        %903 = vmatpush1.bf16.msra.mxu0 0
        %904 = vmatprep.subr.bf16.mxu0 0
        %905 = vmatpush1.bf16.msra.mxu0 0
        %906 = vmatprep.subr.bf16.mxu0 0
        %907 = vmatpush1.bf16.msra.mxu0 0
        %908 = vmatprep.subr.bf16.mxu0 0
        %909 = vmatpush1.bf16.msra.mxu0 0
        %910 = vmatprep.subr.bf16.mxu0 0
        %911 = vmatpush1.bf16.msra.mxu0 0
        %912 = vmatprep.subr.bf16.mxu0 0
        %913 = vmatpush1.bf16.msra.mxu0 0
        %914 = vmatprep.subr.bf16.mxu0 0
        %915 = vmatpush1.bf16.msra.mxu0 %v898
        %916 = vmatprep.subr.bf16.mxu0 0
        %917 = vmatpush2.bf16.msra.mxu0 0
        %918 = vmatprep.subr.bf16.mxu0 0
        %919 = vmatpush2.bf16.msra.mxu0 0
        %920 = vmatprep.subr.bf16.mxu0 0
        %921 = vmatpush2.bf16.msra.mxu0 0
        %922 = vmatprep.subr.bf16.mxu0 0
        %923 = vmatpush2.bf16.msra.mxu0 0
        %924 = vmatprep.subr.bf16.mxu0 0
        %925 = vmatpush2.bf16.msra.mxu0 0
        %926 = vmatprep.subr.bf16.mxu0 0
        %927 = vmatpush2.bf16.msra.mxu0 0
        %928 = vmatprep.subr.bf16.mxu0 0
        %929 = vmatpush2.bf16.msra.mxu0 0
        %930 = vmatprep.subr.bf16.mxu0 0
        %931 = vmatpush2.bf16.msra.mxu0 0
        %932 = vmatprep.mubr.bf16.mxu0 0
        %933 = vmatmul.mubr.bf16.gmra.mxu0 %v891
        %v934 = vpop.f32.mrf.mxu0
        %v935 = vadd.f32 0.0, %v934
        %v936 = vpop.f32.mrf.mxu0
        %v937 = vpop.f32.mrf.mxu0
        %v938 = vadd.f32 0.0, %v937
        %v939 = vpop.f32.mrf.mxu0
        %940 = vmatprep.mubr.bf16.mxu0 0
        %941 = vmatmul.mubr.bf16.gmra.mxu0 %v894
        %v942 = vpop.f32.mrf.mxu0
        %v943 = vadd.f32 0.0, %v942
        %v944 = vpop.f32.mrf.mxu0
        %v945 = vpop.f32.mrf.mxu0
        %v946 = vadd.f32 0.0, %v945
        %v947 = vpop.f32.mrf.mxu0
        %948 = vdwg.mxu0
        %v949 = vrcp.pop %v877
        %v950 = vrcp.pop %v880
        %v951 = vrcp.pop %v883
        %v952 = vrcp.pop %v886
        %v953 = vmul.f32 %v935, %v949
        %v954 = vmul.f32 %v938, %v950
        %v955 = vmul.f32 %v943, %v951
        %v956 = vmul.f32 %v946, %v952
        %v957 = vpack.c.bf16 %v954, %v953
        %v958 = vpack.c.bf16 %v956, %v955
        %v959 = vld [vmem:[%s6] sm:$0xf]
        %v960 = vld [vmem:[%s6 + $0x4] sm:$0xf]
        %v961 = vld [vmem:[%s6 + $0x8] sm:$0xf]
        %v962 = vld [vmem:[%s6 + $0xc] sm:$0xf]
        %v964 = vrot.slane %v957, 4
        %v967 = vunpack.c.l.b16 %v961
        %v968 = vunpack.c.l.b16 %v962
        %v969 = vpack.c.b16 %v968, %v967
        %v972 = vsel %vm794, %v964, 0
        %974 = vmatprep.subr.bf16.mxu0 0
        %975 = vmatpush1.bf16.msra.mxu0 0
        %976 = vmatprep.subr.bf16.mxu0 0
        %977 = vmatpush1.bf16.msra.mxu0 0
        %978 = vmatprep.subr.bf16.mxu0 0
        %979 = vmatpush1.bf16.msra.mxu0 0
        %980 = vmatprep.subr.bf16.mxu0 0
        %981 = vmatpush1.bf16.msra.mxu0 0
        %982 = vmatprep.subr.bf16.mxu0 0
        %983 = vmatpush1.bf16.msra.mxu0 0
        %984 = vmatprep.subr.bf16.mxu0 0
        %985 = vmatpush1.bf16.msra.mxu0 0
        %986 = vmatprep.subr.bf16.mxu0 0
        %987 = vmatpush1.bf16.msra.mxu0 0
        %988 = vmatprep.subr.bf16.mxu0 0
        %989 = vmatpush1.bf16.msra.mxu0 %v969
        %990 = vmatprep.subr.bf16.mxu0 0
        %991 = vmatpush2.bf16.msra.mxu0 0
        %992 = vmatprep.subr.bf16.mxu0 0
        %993 = vmatpush2.bf16.msra.mxu0 0
        %994 = vmatprep.subr.bf16.mxu0 0
        %995 = vmatpush2.bf16.msra.mxu0 0
        %996 = vmatprep.subr.bf16.mxu0 0
        %997 = vmatpush2.bf16.msra.mxu0 0
        %998 = vmatprep.subr.bf16.mxu0 0
        %999 = vmatpush2.bf16.msra.mxu0 0
        %1000 = vmatprep.subr.bf16.mxu0 0
        %1001 = vmatpush2.bf16.msra.mxu0 0
        %1002 = vmatprep.subr.bf16.mxu0 0
        %1003 = vmatpush2.bf16.msra.mxu0 0
        %1004 = vmatprep.subr.bf16.mxu0 0
        %1005 = vmatpush2.bf16.msra.mxu0 0
        %1006 = vmatprep.mubr.bf16.mxu0 0
        %1007 = vmatmul.mubr.bf16.gmra.mxu0 %v972
        %v1008 = vpop.f32.mrf.mxu0
        %v1009 = vadd.f32 0.0, %v1008
        %v1010 = vpop.f32.mrf.mxu0
        %v1011 = vpop.f32.mrf.mxu0
        %v1012 = vpop.f32.mrf.mxu0
        %1013 = vdwg.mxu0
        %v1016 = vunpack.c.l.b16 %v959
        %v1017 = vunpack.c.l.b16 %v960
        %v1018 = vpack.c.b16 %v1017, %v1016
        %v1021 = vsel %vm794, %v957, 0
        %1023 = vmatprep.subr.bf16.mxu0 0
        %1024 = vmatpush1.bf16.msra.mxu0 0
        %1025 = vmatprep.subr.bf16.mxu0 0
        %1026 = vmatpush1.bf16.msra.mxu0 0
        %1027 = vmatprep.subr.bf16.mxu0 0
        %1028 = vmatpush1.bf16.msra.mxu0 0
        %1029 = vmatprep.subr.bf16.mxu0 0
        %1030 = vmatpush1.bf16.msra.mxu0 0
        %1031 = vmatprep.subr.bf16.mxu0 0
        %1032 = vmatpush1.bf16.msra.mxu0 0
        %1033 = vmatprep.subr.bf16.mxu0 0
        %1034 = vmatpush1.bf16.msra.mxu0 0
        %1035 = vmatprep.subr.bf16.mxu0 0
        %1036 = vmatpush1.bf16.msra.mxu0 0
        %1037 = vmatprep.subr.bf16.mxu0 0
        %1038 = vmatpush1.bf16.msra.mxu0 %v1018
        %1039 = vmatprep.subr.bf16.mxu0 0
        %1040 = vmatpush2.bf16.msra.mxu0 0
        %1041 = vmatprep.subr.bf16.mxu0 0
        %1042 = vmatpush2.bf16.msra.mxu0 0
        %1043 = vmatprep.subr.bf16.mxu0 0
        %1044 = vmatpush2.bf16.msra.mxu0 0
        %1045 = vmatprep.subr.bf16.mxu0 0
        %1046 = vmatpush2.bf16.msra.mxu0 0
        %1047 = vmatprep.subr.bf16.mxu0 0
        %1048 = vmatpush2.bf16.msra.mxu0 0
        %1049 = vmatprep.subr.bf16.mxu0 0
        %1050 = vmatpush2.bf16.msra.mxu0 0
        %1051 = vmatprep.subr.bf16.mxu0 0
        %1052 = vmatpush2.bf16.msra.mxu0 0
        %1053 = vmatprep.subr.bf16.mxu0 0
        %1054 = vmatpush2.bf16.msra.mxu0 0
        %1055 = vmatprep.mubr.bf16.mxu0 0
        %1056 = vmatmul.mubr.bf16.gmra.mxu0 %v1021
        %v1057 = vpop.f32.mrf.mxu0
        %v1058 = vadd.f32 %v1009, %v1057
        %v1059 = vpop.f32.mrf.mxu0
        %v1060 = vpop.f32.mrf.mxu0
        %v1061 = vpop.f32.mrf.mxu0
        %1062 = vdwg.mxu0
        %v1063 = vld [vmem:[%s6 + $0x10] sm:$0xf]
        %v1064 = vld [vmem:[%s6 + $0x14] sm:$0xf]
        %v1067 = vunpack.c.l.b16 %v1063
        %v1068 = vunpack.c.l.b16 %v1064
        %v1069 = vpack.c.b16 %v1068, %v1067
        %v1072 = vsel %vm794, %v958, 0
        %1074 = vmatprep.subr.bf16.mxu0 0
        %1075 = vmatpush1.bf16.msra.mxu0 0
        %1076 = vmatprep.subr.bf16.mxu0 0
        %1077 = vmatpush1.bf16.msra.mxu0 0
        %1078 = vmatprep.subr.bf16.mxu0 0
        %1079 = vmatpush1.bf16.msra.mxu0 0
        %1080 = vmatprep.subr.bf16.mxu0 0
        %1081 = vmatpush1.bf16.msra.mxu0 0
        %1082 = vmatprep.subr.bf16.mxu0 0
        %1083 = vmatpush1.bf16.msra.mxu0 0
        %1084 = vmatprep.subr.bf16.mxu0 0
        %1085 = vmatpush1.bf16.msra.mxu0 0
        %1086 = vmatprep.subr.bf16.mxu0 0
        %1087 = vmatpush1.bf16.msra.mxu0 0
        %1088 = vmatprep.subr.bf16.mxu0 0
        %1089 = vmatpush1.bf16.msra.mxu0 %v1069
        %1090 = vmatprep.subr.bf16.mxu0 0
        %1091 = vmatpush2.bf16.msra.mxu0 0
        %1092 = vmatprep.subr.bf16.mxu0 0
        %1093 = vmatpush2.bf16.msra.mxu0 0
        %1094 = vmatprep.subr.bf16.mxu0 0
        %1095 = vmatpush2.bf16.msra.mxu0 0
        %1096 = vmatprep.subr.bf16.mxu0 0
        %1097 = vmatpush2.bf16.msra.mxu0 0
        %1098 = vmatprep.subr.bf16.mxu0 0
        %1099 = vmatpush2.bf16.msra.mxu0 0
        %1100 = vmatprep.subr.bf16.mxu0 0
        %1101 = vmatpush2.bf16.msra.mxu0 0
        %1102 = vmatprep.subr.bf16.mxu0 0
        %1103 = vmatpush2.bf16.msra.mxu0 0
        %1104 = vmatprep.subr.bf16.mxu0 0
        %1105 = vmatpush2.bf16.msra.mxu0 0
        %1106 = vmatprep.mubr.bf16.mxu0 0
        %1107 = vmatmul.mubr.bf16.gmra.mxu0 %v1072
        %v1108 = vpop.f32.mrf.mxu0
        %v1109 = vadd.f32 0.0, %v1108
        %v1110 = vpop.f32.mrf.mxu0
        %v1111 = vpop.f32.mrf.mxu0
        %v1112 = vpop.f32.mrf.mxu0
        %1113 = vdwg.mxu0
        %v1114 = vadd.f32 %v1058, %v1109
        %v1115 = vld [vmem:[%s6 + $0x18] sm:$0xf]
        %v1116 = vld [vmem:[%s6 + $0x1c] sm:$0xf]
        %v1118 = vrot.slane %v958, 4
        %v1121 = vunpack.c.l.b16 %v1115
        %v1122 = vunpack.c.l.b16 %v1116
        %v1123 = vpack.c.b16 %v1122, %v1121
        %v1126 = vsel %vm794, %v1118, 0
        %1128 = vmatprep.subr.bf16.mxu0 0
        %1129 = vmatpush1.bf16.msra.mxu0 0
        %1130 = vmatprep.subr.bf16.mxu0 0
        %1131 = vmatpush1.bf16.msra.mxu0 0
        %1132 = vmatprep.subr.bf16.mxu0 0
        %1133 = vmatpush1.bf16.msra.mxu0 0
        %1134 = vmatprep.subr.bf16.mxu0 0
        %1135 = vmatpush1.bf16.msra.mxu0 0
        %1136 = vmatprep.subr.bf16.mxu0 0
        %1137 = vmatpush1.bf16.msra.mxu0 0
        %1138 = vmatprep.subr.bf16.mxu0 0
        %1139 = vmatpush1.bf16.msra.mxu0 0
        %1140 = vmatprep.subr.bf16.mxu0 0
        %1141 = vmatpush1.bf16.msra.mxu0 0
        %1142 = vmatprep.subr.bf16.mxu0 0
        %1143 = vmatpush1.bf16.msra.mxu0 %v1123
        %1144 = vmatprep.subr.bf16.mxu0 0
        %1145 = vmatpush2.bf16.msra.mxu0 0
        %1146 = vmatprep.subr.bf16.mxu0 0
        %1147 = vmatpush2.bf16.msra.mxu0 0
        %1148 = vmatprep.subr.bf16.mxu0 0
        %1149 = vmatpush2.bf16.msra.mxu0 0
        %1150 = vmatprep.subr.bf16.mxu0 0
        %1151 = vmatpush2.bf16.msra.mxu0 0
        %1152 = vmatprep.subr.bf16.mxu0 0
        %1153 = vmatpush2.bf16.msra.mxu0 0
        %1154 = vmatprep.subr.bf16.mxu0 0
        %1155 = vmatpush2.bf16.msra.mxu0 0
        %1156 = vmatprep.subr.bf16.mxu0 0
        %1157 = vmatpush2.bf16.msra.mxu0 0
        %1158 = vmatprep.subr.bf16.mxu0 0
        %1159 = vmatpush2.bf16.msra.mxu0 0
        %1160 = vmatprep.mubr.bf16.mxu0 0
        %1161 = vmatmul.mubr.bf16.gmra.mxu0 %v1126
        %v1162 = vpop.f32.mrf.mxu0
        %v1163 = vadd.f32 0.0, %v1162
        %v1164 = vpop.f32.mrf.mxu0
        %v1165 = vpop.f32.mrf.mxu0
        %v1166 = vpop.f32.mrf.mxu0
        %1167 = vdwg.mxu0
        %v1168 = vadd.f32 %v1114, %v1163
        %1169 = vst [vmem:[%s319] sm:$0xff] %v1168
        %s1170 = sand.u32 %s207, 1
        %s1171 = scalar_lea.sflag [#allocation3], %s1170
        %s1172 = sand.u32 %s207, 1
        %s1173 = smul.addr %s1172, 8
        %s1174 = scalar_lea.vmem [#allocation2], %s1173
        // Predicated region
        $region49: #{tpu_custom_call.1} parent=47 // pred_check
          %p1175 = pneg %p217
        $region50: #{tpu_custom_call.1} parent=47 // pred_check_branch
          %1177 = sbr.rel (%p1175) target = $region52
        $region51: #{tpu_custom_call.1} parent=47 // pred_region
          %s1179 = ssub.s32 128, 128
          %1180 = vsyncadd %s1171, %s1179
          %s1181 = sadd.s32 %s26, %s25
          %s1182 = smul.addr %s1181, 128
          %s1183 = scalar_lea.hbm %s7, %s1182
          %s1185 = sshll.u32 %s1174, 4
          %s1186 = int_to_ptr.vmem [resolvable:$true] %s1185
          %1188 = dma.vmem_to_hbm [thread:$0]  %s1186, 128, %s1183, %s1171
        $region52: #{tpu_custom_call.1} parent=47 // pred_fallthru
          _
      $region48: #{tpu_custom_call.1} parent=5 // pred_fallthru
        _
      %p1189 = scmp.le.s32.totalorder 2, %s16
      // Predicated region
      $region53: #{tpu_custom_call.1} parent=5 // pred_check
        %p1190 = pneg %p1189
      $region54: #{tpu_custom_call.1} parent=5 // pred_check_branch
        %1192 = sbr.rel (%p1190) target = $region56
      $region55: #{tpu_custom_call.1} parent=5 // pred_region
        %s1193 = ssub.s32 %s16, 2
        // Predicated region
        $region57: #{tpu_custom_call.1} parent=55 // pred_check
          %p1194 = pneg %p223
        $region58: #{tpu_custom_call.1} parent=55 // pred_check_branch
          %1196 = sbr.rel (%p1194) target = $region60
        $region59: #{tpu_custom_call.1} parent=55 // pred_region
          %s1197 = sand.u32 %s208, 1
          %s1198 = scalar_lea.sflag [#allocation3], %s1197
          %s1199 = sand.u32 %s208, 1
          %s1200 = smul.addr %s1199, 8
          %s1201 = scalar_lea.vmem [#allocation2], %s1200
          %1202 = dma.done %s1198, 128
        $region60: #{tpu_custom_call.1} parent=55 // pred_fallthru
          _
      $region56: #{tpu_custom_call.1} parent=5 // pred_fallthru
        _
    $region6: #{tpu_custom_call.1} parent=1 // loop_footer
      %s20 = sadd.s32 1, %s16
    $region7: #{tpu_custom_call.1} parent=1 // loop_footer_branch
      %15 = sbr.rel target = $region3
    $region8: #{tpu_custom_call.1} parent=1 // loop_exit
      _
    %1203 = vsyncpa [#allocation3], 1
    %s1204 = scalar_lea.sflag [#allocation3], 1
    %1205 = vsyncpa %s1204, 1

</llo_original>
